<compile_context>
chip_gen: v5e
topology: v5e:2x2
jax: 0.10.0
libtpu: 0.0.40
codegen_flags: <defaults>
</compile_context>

<pallas_src>
import math
from functools import partial

import jax
import jax.numpy as jnp
from jax import lax
from jax.experimental import pallas as pl
from jax.experimental.pallas import tpu as pltpu


def _gelu_exact(x):
    # matches torch.nn.GELU() (approximate='none'): 0.5*x*(1+erf(x/sqrt(2)))
    return 0.5 * x * (1.0 + lax.erf(x * (1.0 / math.sqrt(2.0))))


def _layernorm(x, gamma, beta, eps):
    mu = jnp.mean(x, axis=-1, keepdims=True)
    var = jnp.mean(jnp.square(x - mu), axis=-1, keepdims=True)
    return (x - mu) * lax.rsqrt(var + eps) * gamma + beta


def _block_kernel(num_heads, head_dim, batch_tile, seq_len, eps, compute_dtype, has_mask,
                  *args):
    idx = 0
    x_ref = args[idx]; idx += 1
    mask_ref = None
    if has_mask:
        mask_ref = args[idx]; idx += 1
    (ln1g_ref, ln1b_ref, win_ref, bin_ref, wo_ref, bo_ref,
     ln2g_ref, ln2b_ref, w1_ref, b1_ref, w2_ref, b2_ref) = args[idx:idx + 12]
    o_ref = args[idx + 12]

    S, H, hd = seq_len, num_heads, head_dim
    E = H * hd
    cdt = compute_dtype

    x = x_ref[...]                                 # (Mt, E) f32, Mt = Bt*S

    # ---- ln_1 (f32) ----
    xn = _layernorm(x, ln1g_ref[0], ln1b_ref[0], eps)

    # ---- fused QKV projection: one big MXU matmul, f32 accumulation ----
    qkv = jnp.dot(xn.astype(cdt), win_ref[...],
                  preferred_element_type=jnp.float32) + bin_ref[0]    # (Mt, 3E) f32

    # ---- attention mask (additive, f32) ----
    if has_mask:
        mask = mask_ref[...]                                          # (S, S)
    else:
        row = lax.broadcasted_iota(jnp.int32, (S, S), 0)
        col = lax.broadcasted_iota(jnp.int32, (S, S), 1)
        mask = jnp.where(col <= row, 0.0, -1e9)                       # causal, built in-kernel

    # ---- per (batch-element, head) attention; head outputs concatenated in registers ----
    # 1/sqrt(head_dim) is already folded into W_q / b_q in the wrapper.
    batch_out = []
    for b in range(batch_tile):
        rows = slice(b * S, (b + 1) * S)
        head_out = []
        for h in range(H):
            qs = slice(h * hd, (h + 1) * hd)
            ks = slice(E + h * hd, E + (h + 1) * hd)
            vs = slice(2 * E + h * hd, 2 * E + (h + 1) * hd)
            qh = qkv[rows, qs].astype(cdt)                            # (S, hd)
            kh = qkv[rows, ks].astype(cdt)                            # (S, hd)
            vh = qkv[rows, vs].astype(cdt)                            # (S, hd)
            # scores = qh @ kh^T without materializing a transpose
            s = lax.dot_general(qh, kh, (((1,), (1,)), ((), ())),
                                preferred_element_type=jnp.float32)   # (S, S) f32
            s = s + mask
            s = s - jnp.max(s, axis=-1, keepdims=True)
            p = jnp.exp(s)
            p = p * pl.reciprocal(jnp.sum(p, axis=-1, keepdims=True), approx=True)
            oh = jnp.dot(p.astype(cdt), vh,
                         preferred_element_type=jnp.float32)          # (S, hd) f32
            head_out.append(oh)
        batch_out.append(jnp.concatenate(head_out, axis=-1))          # (S, E)
    attn_cat = jnp.concatenate(batch_out, axis=0)                     # (Mt, E) dense tile

    # ---- single output projection over all heads / batch rows ----
    attn = jnp.dot(attn_cat.astype(cdt), wo_ref[...],
                   preferred_element_type=jnp.float32) + bo_ref[0]    # (Mt, E) f32

    x1 = xn + attn          # residual uses ln_1 output, matching the torch module

    # ---- ln_2 + MLP ----
    x1n = _layernorm(x1, ln2g_ref[0], ln2b_ref[0], eps)
    h1 = jnp.dot(x1n.astype(cdt), w1_ref[...],
                 preferred_element_type=jnp.float32) + b1_ref[0]      # (Mt, 4E)
    g = _gelu_exact(h1)
    m = jnp.dot(g.astype(cdt), w2_ref[...],
                preferred_element_type=jnp.float32) + b2_ref[0]       # (Mt, E)

    o_ref[...] = (x1 + m).astype(o_ref.dtype)


def init_params(key, embed_dim):
    E = embed_dim
    ks = jax.random.split(key, 8)
    f32 = jnp.float32
    return {
        "ln1_g": jnp.ones((E,), f32),
        "ln1_b": jnp.zeros((E,), f32),
        "ln2_g": jnp.ones((E,), f32),
        "ln2_b": jnp.zeros((E,), f32),
        # PyTorch-layout weights: y = x @ W.T + b
        "in_proj_w": 0.02 * jax.random.normal(ks[0], (3 * E, E), f32),
        "in_proj_b": 0.02 * jax.random.normal(ks[1], (3 * E,), f32),
        "out_proj_w": 0.02 * jax.random.normal(ks[2], (E, E), f32),
        "out_proj_b": 0.02 * jax.random.normal(ks[3], (E,), f32),
        "mlp_w1": 0.02 * jax.random.normal(ks[4], (4 * E, E), f32),
        "mlp_b1": 0.02 * jax.random.normal(ks[5], (4 * E,), f32),
        "mlp_w2": 0.02 * jax.random.normal(ks[6], (E, 4 * E), f32),
        "mlp_b2": 0.02 * jax.random.normal(ks[7], (E,), f32),
    }


def _choose_batch_tile(B, S, target_rows=256, max_rows=2048):
    """Largest/smallest divisor of B so Bt*S approaches target_rows without huge tiles."""
    divisors = [d for d in range(1, B + 1) if B % d == 0]
    fit = [d for d in divisors if d * S <= max_rows] or [1]
    big_enough = [d for d in fit if d * S >= target_rows]
    return min(big_enough) if big_enough else max(fit)


def gpt_block(x_sbe, attn_mask, params, num_heads, eps=1e-5,
              compute_dtype=jnp.bfloat16, batch_tile=None, vmem_limit_bytes=None):
    """x_sbe: (S, B, E) float32 (PyTorch MultiheadAttention default layout).
    attn_mask: (S, S) additive float mask, or None for an in-kernel causal mask."""
    S, B, E = x_sbe.shape
    head_dim = E // num_heads
    cdt = compute_dtype

    if batch_tile is None:
        batch_tile = _choose_batch_tile(B, S)
    Bt = batch_tile
    assert B % Bt == 0, "batch_tile must divide batch"
    Mt = Bt * S

    # (S,B,E) -> (B,S,E) -> flatten to token rows (B*S, E)
    x_flat = jnp.transpose(x_sbe, (1, 0, 2)).reshape(B * S, E)

    wq, wk, wv = jnp.split(params["in_proj_w"], 3, axis=0)
    bq, bk, bv = jnp.split(params["in_proj_b"], 3, axis=0)
    scale = 1.0 / math.sqrt(head_dim)
    wq = wq * scale                                    # fold 1/sqrt(hd) into Q projection
    bq = bq * scale

    def r2(v):                                         # vectors as (1, D) 2-D VMEM tiles
        return v.reshape(1, -1).astype(jnp.float32)

    win = jnp.concatenate([wq, wk, wv], axis=0).T.astype(cdt)          # (E, 3E)
    bin_ = r2(jnp.concatenate([bq, bk, bv]))                           # (1, 3E) f32
    wo = params["out_proj_w"].T.astype(cdt)                            # (E, E)
    w1 = params["mlp_w1"].T.astype(cdt)                                # (E, 4E)
    w2 = params["mlp_w2"].T.astype(cdt)                                # (4E, E)

    has_mask = attn_mask is not None
    kernel_args = [x_flat]
    if has_mask:
        kernel_args.append(attn_mask.astype(jnp.float32))
    kernel_args += [
        r2(params["ln1_g"]), r2(params["ln1_b"]),
        win, bin_,
        wo, r2(params["out_proj_b"]),
        r2(params["ln2_g"]), r2(params["ln2_b"]),
        w1, r2(params["mlp_b1"]),
        w2, r2(params["mlp_b2"]),
    ]

    in_specs = [pl.BlockSpec((Mt, E), lambda i: (i, 0))]               # x: Bt*S token rows
    for a in kernel_args[1:]:
        in_specs.append(pl.BlockSpec(a.shape, lambda i, _n=a.ndim: (0,) * _n))

    compiler_kwargs = dict(dimension_semantics=("parallel",))
    if vmem_limit_bytes is not None:
        compiler_kwargs["vmem_limit_bytes"] = vmem_limit_bytes

    out_flat = pl.pallas_call(
        partial(_block_kernel, num_heads, head_dim, Bt, S, eps, cdt, has_mask),
        out_shape=jax.ShapeDtypeStruct((B * S, E), jnp.float32),
        grid=(B // Bt,),
        in_specs=in_specs,
        out_specs=pl.BlockSpec((Mt, E), lambda i: (i, 0)),
        compiler_params=pltpu.CompilerParams(**compiler_kwargs),
    )(*kernel_args)

    return jnp.transpose(out_flat.reshape(B, S, E), (1, 0, 2))         # back to (S, B, E)


def gpt_block_reference(x_sbe, attn_mask, params, num_heads, eps=1e-5):
    """Pure-JAX f32 reference mirroring torch semantics, for validation."""
    S, B, E = x_sbe.shape
    hd = E // num_heads
    x = jnp.transpose(x_sbe, (1, 0, 2))                # (B, S, E)

    def ln(v, g, b):
        mu = v.mean(-1, keepdims=True)
        var = ((v - mu) ** 2).mean(-1, keepdims=True)
        return (v - mu) / jnp.sqrt(var + eps) * g + b

    xn = ln(x, params["ln1_g"], params["ln1_b"])
    wq, wk, wv = jnp.split(params["in_proj_w"], 3, axis=0)
    bq, bk, bv = jnp.split(params["in_proj_b"], 3, axis=0)
    q = xn @ wq.T + bq
    k = xn @ wk.T + bk
    v = xn @ wv.T + bv
    q = q.reshape(B, S, num_heads, hd).transpose(0, 2, 1, 3)
    k = k.reshape(B, S, num_heads, hd).transpose(0, 2, 1, 3)
    v = v.reshape(B, S, num_heads, hd).transpose(0, 2, 1, 3)
    s = jnp.einsum("bhqd,bhkd->bhqk", q, k) / math.sqrt(hd) + attn_mask
    p = jax.nn.softmax(s, axis=-1)
    o = jnp.einsum("bhqk,bhkd->bhqd", p, v).transpose(0, 2, 1, 3).reshape(B, S, E)
    a = o @ params["out_proj_w"].T + params["out_proj_b"]
    x1 = xn + a
    x1n = ln(x1, params["ln2_g"], params["ln2_b"])
    m = _gelu_exact(x1n @ params["mlp_w1"].T + params["mlp_b1"]) @ params["mlp_w2"].T + params["mlp_b2"]
    out = x1 + m
    return jnp.transpose(out, (1, 0, 2))


if __name__ == "__main__":
    S, B, E, H = 8, 2, 32, 4                           # seq, batch, embed_dim, num_heads

    key = jax.random.PRNGKey(0)
    k_x, k_p = jax.random.split(key)
    x = jax.random.normal(k_x, (S, B, E), jnp.float32)          # (seq, batch, embed)
    params = init_params(k_p, E)

    # causal additive attention mask (S, S); large negative for masked positions
    causal = jnp.tril(jnp.ones((S, S), jnp.bool_))
    attn_mask = jnp.where(causal, 0.0, -1e9).astype(jnp.float32)

    ref = gpt_block_reference(x, attn_mask, params, H)

    # 1) default fast path: bf16 matmuls, f32 accumulation, explicit mask
    out_bf16 = jax.block_until_ready(gpt_block(x, attn_mask, params, H))
    assert out_bf16.shape == (S, B, E)
    assert jnp.allclose(out_bf16, ref, atol=2e-2, rtol=2e-2), "bf16 kernel mismatch vs reference"

    # 2) full-f32 path, explicit mask (tight tolerance)
    out_f32 = jax.block_until_ready(
        gpt_block(x, attn_mask, params, H, compute_dtype=jnp.float32))
    assert jnp.allclose(out_f32, ref, atol=2e-3, rtol=2e-3), "f32 kernel mismatch vs reference"

    # 3) in-kernel causal mask path (attn_mask=None), f32
    out_causal = jax.block_until_ready(
        gpt_block(x, None, params, H, compute_dtype=jnp.float32))
    assert jnp.allclose(out_causal, ref, atol=2e-3, rtol=2e-3), "causal-mask kernel mismatch"

    print("KERNEL_OK")
</pallas_src>

<mosaic_0001>
module attributes {stable_mosaic.version = 11 : i64} {
  func.func @_block_kernel(%arg0: i32, %arg1: memref<16x32xf32, #tpu.memory_space<vmem>>, %arg2: memref<8x8xf32, #tpu.memory_space<vmem>>, %arg3: memref<1x32xf32, #tpu.memory_space<vmem>>, %arg4: memref<1x32xf32, #tpu.memory_space<vmem>>, %arg5: memref<32x96xbf16, #tpu.memory_space<vmem>>, %arg6: memref<1x96xf32, #tpu.memory_space<vmem>>, %arg7: memref<32x32xbf16, #tpu.memory_space<vmem>>, %arg8: memref<1x32xf32, #tpu.memory_space<vmem>>, %arg9: memref<1x32xf32, #tpu.memory_space<vmem>>, %arg10: memref<1x32xf32, #tpu.memory_space<vmem>>, %arg11: memref<32x128xbf16, #tpu.memory_space<vmem>>, %arg12: memref<1x128xf32, #tpu.memory_space<vmem>>, %arg13: memref<128x32xbf16, #tpu.memory_space<vmem>>, %arg14: memref<1x32xf32, #tpu.memory_space<vmem>>, %arg15: memref<16x32xf32, #tpu.memory_space<vmem>>) attributes {dimension_semantics = [#tpu.dimension_semantics<parallel>], iteration_bounds = array<i64: 1>, scalar_prefetch = 0 : i64, scratch_operands = 0 : i64, tpu.core_type = #tpu.core_type<tc>, window_params = [{transform_indices = @transform_0, window_bounds = array<i64: 16, 32>}, {pipeline_mode = #tpu.pipeline_mode<synchronous>, transform_indices = @transform_1, window_bounds = array<i64: 8, 8>}, {pipeline_mode = #tpu.pipeline_mode<synchronous>, transform_indices = @transform_2, window_bounds = array<i64: 1, 32>}, {pipeline_mode = #tpu.pipeline_mode<synchronous>, transform_indices = @transform_3, window_bounds = array<i64: 1, 32>}, {pipeline_mode = #tpu.pipeline_mode<synchronous>, transform_indices = @transform_4, window_bounds = array<i64: 32, 96>}, {pipeline_mode = #tpu.pipeline_mode<synchronous>, transform_indices = @transform_5, window_bounds = array<i64: 1, 96>}, {pipeline_mode = #tpu.pipeline_mode<synchronous>, transform_indices = @transform_6, window_bounds = array<i64: 32, 32>}, {pipeline_mode = #tpu.pipeline_mode<synchronous>, transform_indices = @transform_7, window_bounds = array<i64: 1, 32>}, {pipeline_mode = #tpu.pipeline_mode<synchronous>, transform_indices = @transform_8, window_bounds = array<i64: 1, 32>}, {pipeline_mode = #tpu.pipeline_mode<synchronous>, transform_indices = @transform_9, window_bounds = array<i64: 1, 32>}, {pipeline_mode = #tpu.pipeline_mode<synchronous>, transform_indices = @transform_10, window_bounds = array<i64: 32, 128>}, {pipeline_mode = #tpu.pipeline_mode<synchronous>, transform_indices = @transform_11, window_bounds = array<i64: 1, 128>}, {pipeline_mode = #tpu.pipeline_mode<synchronous>, transform_indices = @transform_12, window_bounds = array<i64: 128, 32>}, {pipeline_mode = #tpu.pipeline_mode<synchronous>, transform_indices = @transform_13, window_bounds = array<i64: 1, 32>}, {transform_indices = @transform_14, window_bounds = array<i64: 16, 32>}]} {
    %c0 = arith.constant 0 : index
    %c0_0 = arith.constant 0 : index
    %0 = vector.load %arg1[%c0, %c0_0] : memref<16x32xf32, #tpu.memory_space<vmem>>, vector<16x32xf32>
    %c0_1 = arith.constant 0 : index
    %c0_2 = arith.constant 0 : index
    %1 = vector.load %arg3[%c0_1, %c0_2] : memref<1x32xf32, #tpu.memory_space<vmem>>, vector<1x32xf32>
    %2 = vector.shape_cast %1 : vector<1x32xf32> to vector<32xf32>
    %c0_3 = arith.constant 0 : index
    %c0_4 = arith.constant 0 : index
    %3 = vector.load %arg4[%c0_3, %c0_4] : memref<1x32xf32, #tpu.memory_space<vmem>>, vector<1x32xf32>
    %4 = vector.shape_cast %3 : vector<1x32xf32> to vector<32xf32>
    %cst = arith.constant dense<0.000000e+00> : vector<16xf32>
    %5 = vector.multi_reduction <add>, %0, %cst [1] : vector<16x32xf32> to vector<16xf32>
    %6 = vector.shape_cast %5 : vector<16xf32> to vector<16x1xf32>
    %cst_5 = arith.constant 3.200000e+01 : f32
    %7 = vector.broadcast %cst_5 : f32 to vector<16x1xf32>
    %8 = arith.divf %6, %7 : vector<16x1xf32>
    %9 = vector.broadcast %8 : vector<16x1xf32> to vector<16x32xf32>
    %10 = arith.subf %0, %9 : vector<16x32xf32>
    %11 = arith.mulf %10, %10 : vector<16x32xf32>
    %cst_6 = arith.constant dense<0.000000e+00> : vector<16xf32>
    %12 = vector.multi_reduction <add>, %11, %cst_6 [1] : vector<16x32xf32> to vector<16xf32>
    %13 = vector.shape_cast %12 : vector<16xf32> to vector<16x1xf32>
    %cst_7 = arith.constant 3.200000e+01 : f32
    %14 = vector.broadcast %cst_7 : f32 to vector<16x1xf32>
    %15 = arith.divf %13, %14 : vector<16x1xf32>
    %16 = vector.broadcast %8 : vector<16x1xf32> to vector<16x32xf32>
    %17 = arith.subf %0, %16 : vector<16x32xf32>
    %cst_8 = arith.constant 9.99999974E-6 : f32
    %18 = vector.broadcast %cst_8 : f32 to vector<16x1xf32>
    %19 = arith.addf %15, %18 : vector<16x1xf32>
    %20 = math.rsqrt %19 : vector<16x1xf32>
    %21 = vector.broadcast %20 : vector<16x1xf32> to vector<16x32xf32>
    %22 = arith.mulf %17, %21 : vector<16x32xf32>
    %23 = vector.shape_cast %2 : vector<32xf32> to vector<1x32xf32>
    %24 = vector.broadcast %23 : vector<1x32xf32> to vector<16x32xf32>
    %25 = arith.mulf %22, %24 : vector<16x32xf32>
    %26 = vector.shape_cast %4 : vector<32xf32> to vector<1x32xf32>
    %27 = vector.broadcast %26 : vector<1x32xf32> to vector<16x32xf32>
    %28 = arith.addf %25, %27 : vector<16x32xf32>
    %29 = arith.truncf %28 : vector<16x32xf32> to vector<16x32xbf16>
    %c0_9 = arith.constant 0 : index
    %c0_10 = arith.constant 0 : index
    %30 = vector.load %arg5[%c0_9, %c0_10] : memref<32x96xbf16, #tpu.memory_space<vmem>>, vector<32x96xbf16>
    %cst_11 = arith.constant dense<0.000000e+00> : vector<16x96xf32>
    %31 = tpu.matmul %29, %30, %cst_11 {dimension_numbers = #tpu.dot_dimension_numbers<[1], [0], [0], [1], [0, 0, 1, 1], [], []>} : vector<16x32xbf16>, vector<32x96xbf16>, vector<16x96xf32> -> vector<16x96xf32>
    %c0_12 = arith.constant 0 : index
    %c0_13 = arith.constant 0 : index
    %32 = vector.load %arg6[%c0_12, %c0_13] : memref<1x96xf32, #tpu.memory_space<vmem>>, vector<1x96xf32>
    %33 = vector.shape_cast %32 : vector<1x96xf32> to vector<96xf32>
    %34 = vector.shape_cast %33 : vector<96xf32> to vector<1x96xf32>
    %35 = vector.broadcast %34 : vector<1x96xf32> to vector<16x96xf32>
    %36 = arith.addf %31, %35 : vector<16x96xf32>
    %c0_14 = arith.constant 0 : index
    %c0_15 = arith.constant 0 : index
    %37 = vector.load %arg2[%c0_14, %c0_15] : memref<8x8xf32, #tpu.memory_space<vmem>>, vector<8x8xf32>
    %38 = vector.extract_strided_slice %36 {offsets = [0, 0], sizes = [8, 8], strides = [1, 1]} : vector<16x96xf32> to vector<8x8xf32>
    %39 = arith.truncf %38 : vector<8x8xf32> to vector<8x8xbf16>
    %40 = vector.extract_strided_slice %36 {offsets = [0, 32], sizes = [8, 8], strides = [1, 1]} : vector<16x96xf32> to vector<8x8xf32>
    %41 = arith.truncf %40 : vector<8x8xf32> to vector<8x8xbf16>
    %42 = vector.extract_strided_slice %36 {offsets = [0, 64], sizes = [8, 8], strides = [1, 1]} : vector<16x96xf32> to vector<8x8xf32>
    %43 = arith.truncf %42 : vector<8x8xf32> to vector<8x8xbf16>
    %cst_16 = arith.constant dense<0.000000e+00> : vector<8x8xf32>
    %44 = tpu.matmul %39, %41, %cst_16 {dimension_numbers = #tpu.dot_dimension_numbers<[1], [1], [0], [0], [0, 0, 1, 0], [], []>} : vector<8x8xbf16>, vector<8x8xbf16>, vector<8x8xf32> -> vector<8x8xf32>
    %45 = arith.addf %44, %37 : vector<8x8xf32>
    %cst_17 = arith.constant dense<0xFF800000> : vector<8xf32>
    %46 = vector.multi_reduction <maximumf>, %45, %cst_17 [1] : vector<8x8xf32> to vector<8xf32>
    %47 = vector.shape_cast %46 : vector<8xf32> to vector<8x1xf32>
    %48 = vector.broadcast %47 : vector<8x1xf32> to vector<8x8xf32>
    %49 = arith.subf %45, %48 : vector<8x8xf32>
    %50 = math.exp %49 : vector<8x8xf32>
    %cst_18 = arith.constant dense<0.000000e+00> : vector<8xf32>
    %51 = vector.multi_reduction <add>, %50, %cst_18 [1] : vector<8x8xf32> to vector<8xf32>
    %52 = vector.shape_cast %51 : vector<8xf32> to vector<8x1xf32>
    %53 = tpu.reciprocal %52 {approx = true} : vector<8x1xf32> -> vector<8x1xf32>
    %54 = vector.broadcast %53 : vector<8x1xf32> to vector<8x8xf32>
    %55 = arith.mulf %50, %54 : vector<8x8xf32>
    %56 = arith.truncf %55 : vector<8x8xf32> to vector<8x8xbf16>
    %cst_19 = arith.constant dense<0.000000e+00> : vector<8x8xf32>
    %57 = tpu.matmul %56, %43, %cst_19 {dimension_numbers = #tpu.dot_dimension_numbers<[1], [0], [0], [1], [0, 0, 1, 1], [], []>} : vector<8x8xbf16>, vector<8x8xbf16>, vector<8x8xf32> -> vector<8x8xf32>
    %58 = vector.extract_strided_slice %36 {offsets = [0, 8], sizes = [8, 8], strides = [1, 1]} : vector<16x96xf32> to vector<8x8xf32>
    %59 = arith.truncf %58 : vector<8x8xf32> to vector<8x8xbf16>
    %60 = vector.extract_strided_slice %36 {offsets = [0, 40], sizes = [8, 8], strides = [1, 1]} : vector<16x96xf32> to vector<8x8xf32>
    %61 = arith.truncf %60 : vector<8x8xf32> to vector<8x8xbf16>
    %62 = vector.extract_strided_slice %36 {offsets = [0, 72], sizes = [8, 8], strides = [1, 1]} : vector<16x96xf32> to vector<8x8xf32>
    %63 = arith.truncf %62 : vector<8x8xf32> to vector<8x8xbf16>
    %cst_20 = arith.constant dense<0.000000e+00> : vector<8x8xf32>
    %64 = tpu.matmul %59, %61, %cst_20 {dimension_numbers = #tpu.dot_dimension_numbers<[1], [1], [0], [0], [0, 0, 1, 0], [], []>} : vector<8x8xbf16>, vector<8x8xbf16>, vector<8x8xf32> -> vector<8x8xf32>
    %65 = arith.addf %64, %37 : vector<8x8xf32>
    %cst_21 = arith.constant dense<0xFF800000> : vector<8xf32>
    %66 = vector.multi_reduction <maximumf>, %65, %cst_21 [1] : vector<8x8xf32> to vector<8xf32>
    %67 = vector.shape_cast %66 : vector<8xf32> to vector<8x1xf32>
    %68 = vector.broadcast %67 : vector<8x1xf32> to vector<8x8xf32>
    %69 = arith.subf %65, %68 : vector<8x8xf32>
    %70 = math.exp %69 : vector<8x8xf32>
    %cst_22 = arith.constant dense<0.000000e+00> : vector<8xf32>
    %71 = vector.multi_reduction <add>, %70, %cst_22 [1] : vector<8x8xf32> to vector<8xf32>
    %72 = vector.shape_cast %71 : vector<8xf32> to vector<8x1xf32>
    %73 = tpu.reciprocal %72 {approx = true} : vector<8x1xf32> -> vector<8x1xf32>
    %74 = vector.broadcast %73 : vector<8x1xf32> to vector<8x8xf32>
    %75 = arith.mulf %70, %74 : vector<8x8xf32>
    %76 = arith.truncf %75 : vector<8x8xf32> to vector<8x8xbf16>
    %cst_23 = arith.constant dense<0.000000e+00> : vector<8x8xf32>
    %77 = tpu.matmul %76, %63, %cst_23 {dimension_numbers = #tpu.dot_dimension_numbers<[1], [0], [0], [1], [0, 0, 1, 1], [], []>} : vector<8x8xbf16>, vector<8x8xbf16>, vector<8x8xf32> -> vector<8x8xf32>
    %78 = vector.extract_strided_slice %36 {offsets = [0, 16], sizes = [8, 8], strides = [1, 1]} : vector<16x96xf32> to vector<8x8xf32>
    %79 = arith.truncf %78 : vector<8x8xf32> to vector<8x8xbf16>
    %80 = vector.extract_strided_slice %36 {offsets = [0, 48], sizes = [8, 8], strides = [1, 1]} : vector<16x96xf32> to vector<8x8xf32>
    %81 = arith.truncf %80 : vector<8x8xf32> to vector<8x8xbf16>
    %82 = vector.extract_strided_slice %36 {offsets = [0, 80], sizes = [8, 8], strides = [1, 1]} : vector<16x96xf32> to vector<8x8xf32>
    %83 = arith.truncf %82 : vector<8x8xf32> to vector<8x8xbf16>
    %cst_24 = arith.constant dense<0.000000e+00> : vector<8x8xf32>
    %84 = tpu.matmul %79, %81, %cst_24 {dimension_numbers = #tpu.dot_dimension_numbers<[1], [1], [0], [0], [0, 0, 1, 0], [], []>} : vector<8x8xbf16>, vector<8x8xbf16>, vector<8x8xf32> -> vector<8x8xf32>
    %85 = arith.addf %84, %37 : vector<8x8xf32>
    %cst_25 = arith.constant dense<0xFF800000> : vector<8xf32>
    %86 = vector.multi_reduction <maximumf>, %85, %cst_25 [1] : vector<8x8xf32> to vector<8xf32>
    %87 = vector.shape_cast %86 : vector<8xf32> to vector<8x1xf32>
    %88 = vector.broadcast %87 : vector<8x1xf32> to vector<8x8xf32>
    %89 = arith.subf %85, %88 : vector<8x8xf32>
    %90 = math.exp %89 : vector<8x8xf32>
    %cst_26 = arith.constant dense<0.000000e+00> : vector<8xf32>
    %91 = vector.multi_reduction <add>, %90, %cst_26 [1] : vector<8x8xf32> to vector<8xf32>
    %92 = vector.shape_cast %91 : vector<8xf32> to vector<8x1xf32>
    %93 = tpu.reciprocal %92 {approx = true} : vector<8x1xf32> -> vector<8x1xf32>
    %94 = vector.broadcast %93 : vector<8x1xf32> to vector<8x8xf32>
    %95 = arith.mulf %90, %94 : vector<8x8xf32>
    %96 = arith.truncf %95 : vector<8x8xf32> to vector<8x8xbf16>
    %cst_27 = arith.constant dense<0.000000e+00> : vector<8x8xf32>
    %97 = tpu.matmul %96, %83, %cst_27 {dimension_numbers = #tpu.dot_dimension_numbers<[1], [0], [0], [1], [0, 0, 1, 1], [], []>} : vector<8x8xbf16>, vector<8x8xbf16>, vector<8x8xf32> -> vector<8x8xf32>
    %98 = vector.extract_strided_slice %36 {offsets = [0, 24], sizes = [8, 8], strides = [1, 1]} : vector<16x96xf32> to vector<8x8xf32>
    %99 = arith.truncf %98 : vector<8x8xf32> to vector<8x8xbf16>
    %100 = vector.extract_strided_slice %36 {offsets = [0, 56], sizes = [8, 8], strides = [1, 1]} : vector<16x96xf32> to vector<8x8xf32>
    %101 = arith.truncf %100 : vector<8x8xf32> to vector<8x8xbf16>
    %102 = vector.extract_strided_slice %36 {offsets = [0, 88], sizes = [8, 8], strides = [1, 1]} : vector<16x96xf32> to vector<8x8xf32>
    %103 = arith.truncf %102 : vector<8x8xf32> to vector<8x8xbf16>
    %cst_28 = arith.constant dense<0.000000e+00> : vector<8x8xf32>
    %104 = tpu.matmul %99, %101, %cst_28 {dimension_numbers = #tpu.dot_dimension_numbers<[1], [1], [0], [0], [0, 0, 1, 0], [], []>} : vector<8x8xbf16>, vector<8x8xbf16>, vector<8x8xf32> -> vector<8x8xf32>
    %105 = arith.addf %104, %37 : vector<8x8xf32>
    %cst_29 = arith.constant dense<0xFF800000> : vector<8xf32>
    %106 = vector.multi_reduction <maximumf>, %105, %cst_29 [1] : vector<8x8xf32> to vector<8xf32>
    %107 = vector.shape_cast %106 : vector<8xf32> to vector<8x1xf32>
    %108 = vector.broadcast %107 : vector<8x1xf32> to vector<8x8xf32>
    %109 = arith.subf %105, %108 : vector<8x8xf32>
    %110 = math.exp %109 : vector<8x8xf32>
    %cst_30 = arith.constant dense<0.000000e+00> : vector<8xf32>
    %111 = vector.multi_reduction <add>, %110, %cst_30 [1] : vector<8x8xf32> to vector<8xf32>
    %112 = vector.shape_cast %111 : vector<8xf32> to vector<8x1xf32>
    %113 = tpu.reciprocal %112 {approx = true} : vector<8x1xf32> -> vector<8x1xf32>
    %114 = vector.broadcast %113 : vector<8x1xf32> to vector<8x8xf32>
    %115 = arith.mulf %110, %114 : vector<8x8xf32>
    %116 = arith.truncf %115 : vector<8x8xf32> to vector<8x8xbf16>
    %cst_31 = arith.constant dense<0.000000e+00> : vector<8x8xf32>
    %117 = tpu.matmul %116, %103, %cst_31 {dimension_numbers = #tpu.dot_dimension_numbers<[1], [0], [0], [1], [0, 0, 1, 1], [], []>} : vector<8x8xbf16>, vector<8x8xbf16>, vector<8x8xf32> -> vector<8x8xf32>
    %118 = tpu.concatenate %57, %77, %97, %117 in 1 : vector<8x8xf32>, vector<8x8xf32>, vector<8x8xf32>, vector<8x8xf32> -> vector<8x32xf32>
    %119 = vector.extract_strided_slice %36 {offsets = [8, 0], sizes = [8, 8], strides = [1, 1]} : vector<16x96xf32> to vector<8x8xf32>
    %120 = arith.truncf %119 : vector<8x8xf32> to vector<8x8xbf16>
    %121 = vector.extract_strided_slice %36 {offsets = [8, 32], sizes = [8, 8], strides = [1, 1]} : vector<16x96xf32> to vector<8x8xf32>
    %122 = arith.truncf %121 : vector<8x8xf32> to vector<8x8xbf16>
    %123 = vector.extract_strided_slice %36 {offsets = [8, 64], sizes = [8, 8], strides = [1, 1]} : vector<16x96xf32> to vector<8x8xf32>
    %124 = arith.truncf %123 : vector<8x8xf32> to vector<8x8xbf16>
    %cst_32 = arith.constant dense<0.000000e+00> : vector<8x8xf32>
    %125 = tpu.matmul %120, %122, %cst_32 {dimension_numbers = #tpu.dot_dimension_numbers<[1], [1], [0], [0], [0, 0, 1, 0], [], []>} : vector<8x8xbf16>, vector<8x8xbf16>, vector<8x8xf32> -> vector<8x8xf32>
    %126 = arith.addf %125, %37 : vector<8x8xf32>
    %cst_33 = arith.constant dense<0xFF800000> : vector<8xf32>
    %127 = vector.multi_reduction <maximumf>, %126, %cst_33 [1] : vector<8x8xf32> to vector<8xf32>
    %128 = vector.shape_cast %127 : vector<8xf32> to vector<8x1xf32>
    %129 = vector.broadcast %128 : vector<8x1xf32> to vector<8x8xf32>
    %130 = arith.subf %126, %129 : vector<8x8xf32>
    %131 = math.exp %130 : vector<8x8xf32>
    %cst_34 = arith.constant dense<0.000000e+00> : vector<8xf32>
    %132 = vector.multi_reduction <add>, %131, %cst_34 [1] : vector<8x8xf32> to vector<8xf32>
    %133 = vector.shape_cast %132 : vector<8xf32> to vector<8x1xf32>
    %134 = tpu.reciprocal %133 {approx = true} : vector<8x1xf32> -> vector<8x1xf32>
    %135 = vector.broadcast %134 : vector<8x1xf32> to vector<8x8xf32>
    %136 = arith.mulf %131, %135 : vector<8x8xf32>
    %137 = arith.truncf %136 : vector<8x8xf32> to vector<8x8xbf16>
    %cst_35 = arith.constant dense<0.000000e+00> : vector<8x8xf32>
    %138 = tpu.matmul %137, %124, %cst_35 {dimension_numbers = #tpu.dot_dimension_numbers<[1], [0], [0], [1], [0, 0, 1, 1], [], []>} : vector<8x8xbf16>, vector<8x8xbf16>, vector<8x8xf32> -> vector<8x8xf32>
    %139 = vector.extract_strided_slice %36 {offsets = [8, 8], sizes = [8, 8], strides = [1, 1]} : vector<16x96xf32> to vector<8x8xf32>
    %140 = arith.truncf %139 : vector<8x8xf32> to vector<8x8xbf16>
    %141 = vector.extract_strided_slice %36 {offsets = [8, 40], sizes = [8, 8], strides = [1, 1]} : vector<16x96xf32> to vector<8x8xf32>
    %142 = arith.truncf %141 : vector<8x8xf32> to vector<8x8xbf16>
    %143 = vector.extract_strided_slice %36 {offsets = [8, 72], sizes = [8, 8], strides = [1, 1]} : vector<16x96xf32> to vector<8x8xf32>
    %144 = arith.truncf %143 : vector<8x8xf32> to vector<8x8xbf16>
    %cst_36 = arith.constant dense<0.000000e+00> : vector<8x8xf32>
    %145 = tpu.matmul %140, %142, %cst_36 {dimension_numbers = #tpu.dot_dimension_numbers<[1], [1], [0], [0], [0, 0, 1, 0], [], []>} : vector<8x8xbf16>, vector<8x8xbf16>, vector<8x8xf32> -> vector<8x8xf32>
    %146 = arith.addf %145, %37 : vector<8x8xf32>
    %cst_37 = arith.constant dense<0xFF800000> : vector<8xf32>
    %147 = vector.multi_reduction <maximumf>, %146, %cst_37 [1] : vector<8x8xf32> to vector<8xf32>
    %148 = vector.shape_cast %147 : vector<8xf32> to vector<8x1xf32>
    %149 = vector.broadcast %148 : vector<8x1xf32> to vector<8x8xf32>
    %150 = arith.subf %146, %149 : vector<8x8xf32>
    %151 = math.exp %150 : vector<8x8xf32>
    %cst_38 = arith.constant dense<0.000000e+00> : vector<8xf32>
    %152 = vector.multi_reduction <add>, %151, %cst_38 [1] : vector<8x8xf32> to vector<8xf32>
    %153 = vector.shape_cast %152 : vector<8xf32> to vector<8x1xf32>
    %154 = tpu.reciprocal %153 {approx = true} : vector<8x1xf32> -> vector<8x1xf32>
    %155 = vector.broadcast %154 : vector<8x1xf32> to vector<8x8xf32>
    %156 = arith.mulf %151, %155 : vector<8x8xf32>
    %157 = arith.truncf %156 : vector<8x8xf32> to vector<8x8xbf16>
    %cst_39 = arith.constant dense<0.000000e+00> : vector<8x8xf32>
    %158 = tpu.matmul %157, %144, %cst_39 {dimension_numbers = #tpu.dot_dimension_numbers<[1], [0], [0], [1], [0, 0, 1, 1], [], []>} : vector<8x8xbf16>, vector<8x8xbf16>, vector<8x8xf32> -> vector<8x8xf32>
    %159 = vector.extract_strided_slice %36 {offsets = [8, 16], sizes = [8, 8], strides = [1, 1]} : vector<16x96xf32> to vector<8x8xf32>
    %160 = arith.truncf %159 : vector<8x8xf32> to vector<8x8xbf16>
    %161 = vector.extract_strided_slice %36 {offsets = [8, 48], sizes = [8, 8], strides = [1, 1]} : vector<16x96xf32> to vector<8x8xf32>
    %162 = arith.truncf %161 : vector<8x8xf32> to vector<8x8xbf16>
    %163 = vector.extract_strided_slice %36 {offsets = [8, 80], sizes = [8, 8], strides = [1, 1]} : vector<16x96xf32> to vector<8x8xf32>
    %164 = arith.truncf %163 : vector<8x8xf32> to vector<8x8xbf16>
    %cst_40 = arith.constant dense<0.000000e+00> : vector<8x8xf32>
    %165 = tpu.matmul %160, %162, %cst_40 {dimension_numbers = #tpu.dot_dimension_numbers<[1], [1], [0], [0], [0, 0, 1, 0], [], []>} : vector<8x8xbf16>, vector<8x8xbf16>, vector<8x8xf32> -> vector<8x8xf32>
    %166 = arith.addf %165, %37 : vector<8x8xf32>
    %cst_41 = arith.constant dense<0xFF800000> : vector<8xf32>
    %167 = vector.multi_reduction <maximumf>, %166, %cst_41 [1] : vector<8x8xf32> to vector<8xf32>
    %168 = vector.shape_cast %167 : vector<8xf32> to vector<8x1xf32>
    %169 = vector.broadcast %168 : vector<8x1xf32> to vector<8x8xf32>
    %170 = arith.subf %166, %169 : vector<8x8xf32>
    %171 = math.exp %170 : vector<8x8xf32>
    %cst_42 = arith.constant dense<0.000000e+00> : vector<8xf32>
    %172 = vector.multi_reduction <add>, %171, %cst_42 [1] : vector<8x8xf32> to vector<8xf32>
    %173 = vector.shape_cast %172 : vector<8xf32> to vector<8x1xf32>
    %174 = tpu.reciprocal %173 {approx = true} : vector<8x1xf32> -> vector<8x1xf32>
    %175 = vector.broadcast %174 : vector<8x1xf32> to vector<8x8xf32>
    %176 = arith.mulf %171, %175 : vector<8x8xf32>
    %177 = arith.truncf %176 : vector<8x8xf32> to vector<8x8xbf16>
    %cst_43 = arith.constant dense<0.000000e+00> : vector<8x8xf32>
    %178 = tpu.matmul %177, %164, %cst_43 {dimension_numbers = #tpu.dot_dimension_numbers<[1], [0], [0], [1], [0, 0, 1, 1], [], []>} : vector<8x8xbf16>, vector<8x8xbf16>, vector<8x8xf32> -> vector<8x8xf32>
    %179 = vector.extract_strided_slice %36 {offsets = [8, 24], sizes = [8, 8], strides = [1, 1]} : vector<16x96xf32> to vector<8x8xf32>
    %180 = arith.truncf %179 : vector<8x8xf32> to vector<8x8xbf16>
    %181 = vector.extract_strided_slice %36 {offsets = [8, 56], sizes = [8, 8], strides = [1, 1]} : vector<16x96xf32> to vector<8x8xf32>
    %182 = arith.truncf %181 : vector<8x8xf32> to vector<8x8xbf16>
    %183 = vector.extract_strided_slice %36 {offsets = [8, 88], sizes = [8, 8], strides = [1, 1]} : vector<16x96xf32> to vector<8x8xf32>
    %184 = arith.truncf %183 : vector<8x8xf32> to vector<8x8xbf16>
    %cst_44 = arith.constant dense<0.000000e+00> : vector<8x8xf32>
    %185 = tpu.matmul %180, %182, %cst_44 {dimension_numbers = #tpu.dot_dimension_numbers<[1], [1], [0], [0], [0, 0, 1, 0], [], []>} : vector<8x8xbf16>, vector<8x8xbf16>, vector<8x8xf32> -> vector<8x8xf32>
    %186 = arith.addf %185, %37 : vector<8x8xf32>
    %cst_45 = arith.constant dense<0xFF800000> : vector<8xf32>
    %187 = vector.multi_reduction <maximumf>, %186, %cst_45 [1] : vector<8x8xf32> to vector<8xf32>
    %188 = vector.shape_cast %187 : vector<8xf32> to vector<8x1xf32>
    %189 = vector.broadcast %188 : vector<8x1xf32> to vector<8x8xf32>
    %190 = arith.subf %186, %189 : vector<8x8xf32>
    %191 = math.exp %190 : vector<8x8xf32>
    %cst_46 = arith.constant dense<0.000000e+00> : vector<8xf32>
    %192 = vector.multi_reduction <add>, %191, %cst_46 [1] : vector<8x8xf32> to vector<8xf32>
    %193 = vector.shape_cast %192 : vector<8xf32> to vector<8x1xf32>
    %194 = tpu.reciprocal %193 {approx = true} : vector<8x1xf32> -> vector<8x1xf32>
    %195 = vector.broadcast %194 : vector<8x1xf32> to vector<8x8xf32>
    %196 = arith.mulf %191, %195 : vector<8x8xf32>
    %197 = arith.truncf %196 : vector<8x8xf32> to vector<8x8xbf16>
    %cst_47 = arith.constant dense<0.000000e+00> : vector<8x8xf32>
    %198 = tpu.matmul %197, %184, %cst_47 {dimension_numbers = #tpu.dot_dimension_numbers<[1], [0], [0], [1], [0, 0, 1, 1], [], []>} : vector<8x8xbf16>, vector<8x8xbf16>, vector<8x8xf32> -> vector<8x8xf32>
    %199 = tpu.concatenate %138, %158, %178, %198 in 1 : vector<8x8xf32>, vector<8x8xf32>, vector<8x8xf32>, vector<8x8xf32> -> vector<8x32xf32>
    %200 = tpu.concatenate %118, %199 in 0 : vector<8x32xf32>, vector<8x32xf32> -> vector<16x32xf32>
    %201 = arith.truncf %200 : vector<16x32xf32> to vector<16x32xbf16>
    %c0_48 = arith.constant 0 : index
    %c0_49 = arith.constant 0 : index
    %202 = vector.load %arg7[%c0_48, %c0_49] : memref<32x32xbf16, #tpu.memory_space<vmem>>, vector<32x32xbf16>
    %cst_50 = arith.constant dense<0.000000e+00> : vector<16x32xf32>
    %203 = tpu.matmul %201, %202, %cst_50 {dimension_numbers = #tpu.dot_dimension_numbers<[1], [0], [0], [1], [0, 0, 1, 1], [], []>} : vector<16x32xbf16>, vector<32x32xbf16>, vector<16x32xf32> -> vector<16x32xf32>
    %c0_51 = arith.constant 0 : index
    %c0_52 = arith.constant 0 : index
    %204 = vector.load %arg8[%c0_51, %c0_52] : memref<1x32xf32, #tpu.memory_space<vmem>>, vector<1x32xf32>
    %205 = vector.shape_cast %204 : vector<1x32xf32> to vector<32xf32>
    %206 = vector.shape_cast %205 : vector<32xf32> to vector<1x32xf32>
    %207 = vector.broadcast %206 : vector<1x32xf32> to vector<16x32xf32>
    %208 = arith.addf %203, %207 : vector<16x32xf32>
    %209 = arith.addf %28, %208 : vector<16x32xf32>
    %c0_53 = arith.constant 0 : index
    %c0_54 = arith.constant 0 : index
    %210 = vector.load %arg9[%c0_53, %c0_54] : memref<1x32xf32, #tpu.memory_space<vmem>>, vector<1x32xf32>
    %211 = vector.shape_cast %210 : vector<1x32xf32> to vector<32xf32>
    %c0_55 = arith.constant 0 : index
    %c0_56 = arith.constant 0 : index
    %212 = vector.load %arg10[%c0_55, %c0_56] : memref<1x32xf32, #tpu.memory_space<vmem>>, vector<1x32xf32>
    %213 = vector.shape_cast %212 : vector<1x32xf32> to vector<32xf32>
    %cst_57 = arith.constant dense<0.000000e+00> : vector<16xf32>
    %214 = vector.multi_reduction <add>, %209, %cst_57 [1] : vector<16x32xf32> to vector<16xf32>
    %215 = vector.shape_cast %214 : vector<16xf32> to vector<16x1xf32>
    %cst_58 = arith.constant 3.200000e+01 : f32
    %216 = vector.broadcast %cst_58 : f32 to vector<16x1xf32>
    %217 = arith.divf %215, %216 : vector<16x1xf32>
    %218 = vector.broadcast %217 : vector<16x1xf32> to vector<16x32xf32>
    %219 = arith.subf %209, %218 : vector<16x32xf32>
    %220 = arith.mulf %219, %219 : vector<16x32xf32>
    %cst_59 = arith.constant dense<0.000000e+00> : vector<16xf32>
    %221 = vector.multi_reduction <add>, %220, %cst_59 [1] : vector<16x32xf32> to vector<16xf32>
    %222 = vector.shape_cast %221 : vector<16xf32> to vector<16x1xf32>
    %cst_60 = arith.constant 3.200000e+01 : f32
    %223 = vector.broadcast %cst_60 : f32 to vector<16x1xf32>
    %224 = arith.divf %222, %223 : vector<16x1xf32>
    %225 = vector.broadcast %217 : vector<16x1xf32> to vector<16x32xf32>
    %226 = arith.subf %209, %225 : vector<16x32xf32>
    %cst_61 = arith.constant 9.99999974E-6 : f32
    %227 = vector.broadcast %cst_61 : f32 to vector<16x1xf32>
    %228 = arith.addf %224, %227 : vector<16x1xf32>
    %229 = math.rsqrt %228 : vector<16x1xf32>
    %230 = vector.broadcast %229 : vector<16x1xf32> to vector<16x32xf32>
    %231 = arith.mulf %226, %230 : vector<16x32xf32>
    %232 = vector.shape_cast %211 : vector<32xf32> to vector<1x32xf32>
    %233 = vector.broadcast %232 : vector<1x32xf32> to vector<16x32xf32>
    %234 = arith.mulf %231, %233 : vector<16x32xf32>
    %235 = vector.shape_cast %213 : vector<32xf32> to vector<1x32xf32>
    %236 = vector.broadcast %235 : vector<1x32xf32> to vector<16x32xf32>
    %237 = arith.addf %234, %236 : vector<16x32xf32>
    %238 = arith.truncf %237 : vector<16x32xf32> to vector<16x32xbf16>
    %c0_62 = arith.constant 0 : index
    %c0_63 = arith.constant 0 : index
    %239 = vector.load %arg11[%c0_62, %c0_63] : memref<32x128xbf16, #tpu.memory_space<vmem>>, vector<32x128xbf16>
    %cst_64 = arith.constant dense<0.000000e+00> : vector<16x128xf32>
    %240 = tpu.matmul %238, %239, %cst_64 {dimension_numbers = #tpu.dot_dimension_numbers<[1], [0], [0], [1], [0, 0, 1, 1], [], []>} : vector<16x32xbf16>, vector<32x128xbf16>, vector<16x128xf32> -> vector<16x128xf32>
    %c0_65 = arith.constant 0 : index
    %c0_66 = arith.constant 0 : index
    %241 = vector.load %arg12[%c0_65, %c0_66] : memref<1x128xf32, #tpu.memory_space<vmem>>, vector<1x128xf32>
    %242 = vector.shape_cast %241 : vector<1x128xf32> to vector<128xf32>
    %243 = vector.shape_cast %242 : vector<128xf32> to vector<1x128xf32>
    %244 = vector.broadcast %243 : vector<1x128xf32> to vector<16x128xf32>
    %245 = arith.addf %240, %244 : vector<16x128xf32>
    %cst_67 = arith.constant 5.000000e-01 : f32
    %246 = vector.broadcast %cst_67 : f32 to vector<16x128xf32>
    %247 = arith.mulf %246, %245 : vector<16x128xf32>
    %cst_68 = arith.constant 0.707106769 : f32
    %248 = vector.broadcast %cst_68 : f32 to vector<16x128xf32>
    %249 = arith.mulf %245, %248 : vector<16x128xf32>
    %250 = math.erf %249 : vector<16x128xf32>
    %cst_69 = arith.constant 1.000000e+00 : f32
    %251 = vector.broadcast %cst_69 : f32 to vector<16x128xf32>
    %252 = arith.addf %251, %250 : vector<16x128xf32>
    %253 = arith.mulf %247, %252 : vector<16x128xf32>
    %254 = arith.truncf %253 : vector<16x128xf32> to vector<16x128xbf16>
    %c0_70 = arith.constant 0 : index
    %c0_71 = arith.constant 0 : index
    %255 = vector.load %arg13[%c0_70, %c0_71] : memref<128x32xbf16, #tpu.memory_space<vmem>>, vector<128x32xbf16>
    %cst_72 = arith.constant dense<0.000000e+00> : vector<16x32xf32>
    %256 = tpu.matmul %254, %255, %cst_72 {dimension_numbers = #tpu.dot_dimension_numbers<[1], [0], [0], [1], [0, 0, 1, 1], [], []>} : vector<16x128xbf16>, vector<128x32xbf16>, vector<16x32xf32> -> vector<16x32xf32>
    %c0_73 = arith.constant 0 : index
    %c0_74 = arith.constant 0 : index
    %257 = vector.load %arg14[%c0_73, %c0_74] : memref<1x32xf32, #tpu.memory_space<vmem>>, vector<1x32xf32>
    %258 = vector.shape_cast %257 : vector<1x32xf32> to vector<32xf32>
    %259 = vector.shape_cast %258 : vector<32xf32> to vector<1x32xf32>
    %260 = vector.broadcast %259 : vector<1x32xf32> to vector<16x32xf32>
    %261 = arith.addf %256, %260 : vector<16x32xf32>
    %262 = arith.addf %209, %261 : vector<16x32xf32>
    %c0_75 = arith.constant 0 : index
    %c0_76 = arith.constant 0 : index
    %263 = vector.load %arg15[%c0_75, %c0_76] : memref<16x32xf32, #tpu.memory_space<vmem>>, vector<16x32xf32>
    tpu.vector_store %arg15[%c0_75, %c0_76], %262 {strides = array<i32>} : memref<16x32xf32, #tpu.memory_space<vmem>>, vector<16x32xf32>,
    return
  }
  func.func @transform_0(%arg0: i32) -> (i32, i32) {
    %c0_i32 = arith.constant 0 : i32
    %c0_i32_0 = arith.constant 0 : i32
    return %arg0, %c0_i32 : i32, i32
  }
  func.func @transform_1(%arg0: i32) -> (i32, i32) {
    %c0_i32 = arith.constant 0 : i32
    %c0_i32_0 = arith.constant 0 : i32
    %c0_i32_1 = arith.constant 0 : i32
    return %c0_i32, %c0_i32_0 : i32, i32
  }
  func.func @transform_2(%arg0: i32) -> (i32, i32) {
    %c0_i32 = arith.constant 0 : i32
    %c0_i32_0 = arith.constant 0 : i32
    %c0_i32_1 = arith.constant 0 : i32
    return %c0_i32, %c0_i32_0 : i32, i32
  }
  func.func @transform_3(%arg0: i32) -> (i32, i32) {
    %c0_i32 = arith.constant 0 : i32
    %c0_i32_0 = arith.constant 0 : i32
    %c0_i32_1 = arith.constant 0 : i32
    return %c0_i32, %c0_i32_0 : i32, i32
  }
  func.func @transform_4(%arg0: i32) -> (i32, i32) {
    %c0_i32 = arith.constant 0 : i32
    %c0_i32_0 = arith.constant 0 : i32
    %c0_i32_1 = arith.constant 0 : i32
    return %c0_i32, %c0_i32_0 : i32, i32
  }
  func.func @transform_5(%arg0: i32) -> (i32, i32) {
    %c0_i32 = arith.constant 0 : i32
    %c0_i32_0 = arith.constant 0 : i32
    %c0_i32_1 = arith.constant 0 : i32
    return %c0_i32, %c0_i32_0 : i32, i32
  }
  func.func @transform_6(%arg0: i32) -> (i32, i32) {
    %c0_i32 = arith.constant 0 : i32
    %c0_i32_0 = arith.constant 0 : i32
    %c0_i32_1 = arith.constant 0 : i32
    return %c0_i32, %c0_i32_0 : i32, i32
  }
  func.func @transform_7(%arg0: i32) -> (i32, i32) {
    %c0_i32 = arith.constant 0 : i32
    %c0_i32_0 = arith.constant 0 : i32
    %c0_i32_1 = arith.constant 0 : i32
    return %c0_i32, %c0_i32_0 : i32, i32
  }
  func.func @transform_8(%arg0: i32) -> (i32, i32) {
    %c0_i32 = arith.constant 0 : i32
    %c0_i32_0 = arith.constant 0 : i32
    %c0_i32_1 = arith.constant 0 : i32
    return %c0_i32, %c0_i32_0 : i32, i32
  }
  func.func @transform_9(%arg0: i32) -> (i32, i32) {
    %c0_i32 = arith.constant 0 : i32
    %c0_i32_0 = arith.constant 0 : i32
    %c0_i32_1 = arith.constant 0 : i32
    return %c0_i32, %c0_i32_0 : i32, i32
  }
  func.func @transform_10(%arg0: i32) -> (i32, i32) {
    %c0_i32 = arith.constant 0 : i32
    %c0_i32_0 = arith.constant 0 : i32
    %c0_i32_1 = arith.constant 0 : i32
    return %c0_i32, %c0_i32_0 : i32, i32
  }
  func.func @transform_11(%arg0: i32) -> (i32, i32) {
    %c0_i32 = arith.constant 0 : i32
    %c0_i32_0 = arith.constant 0 : i32
    %c0_i32_1 = arith.constant 0 : i32
    return %c0_i32, %c0_i32_0 : i32, i32
  }
  func.func @transform_12(%arg0: i32) -> (i32, i32) {
    %c0_i32 = arith.constant 0 : i32
    %c0_i32_0 = arith.constant 0 : i32
    %c0_i32_1 = arith.constant 0 : i32
    return %c0_i32, %c0_i32_0 : i32, i32
  }
  func.func @transform_13(%arg0: i32) -> (i32, i32) {
    %c0_i32 = arith.constant 0 : i32
    %c0_i32_0 = arith.constant 0 : i32
    %c0_i32_1 = arith.constant 0 : i32
    return %c0_i32, %c0_i32_0 : i32, i32
  }
  func.func @transform_14(%arg0: i32) -> (i32, i32) {
    %c0_i32 = arith.constant 0 : i32
    %c0_i32_0 = arith.constant 0 : i32
    return %arg0, %c0_i32 : i32, i32
  }
}

</mosaic_0001>

<llo_original>
// kernel: tpu_custom_call.1
$region0: #{tpu_custom_call.1}
  #allocation0 [shape = 'u32[]', space=smem, size = 0x4, offset = 0x4, fixed_abs, tag = 'smem constant byte address 0x4 - core index']
  #allocation1 [shape = 'u32[72,128]{1,0:T(1,128)}', space=vmem, size = 0x9000, scoped, tag = 'internal scratch']
  %s0 = inlined_call_operand.vmem [shape: f32[16,32], index: 0, kind: input, shape index: {}]
  %s1 = inlined_call_operand.vmem [shape: f32[8,8], index: 1, kind: input, shape index: {}]
  %s2 = inlined_call_operand.vmem [shape: f32[1,32], index: 2, kind: input, shape index: {}]
  %s3 = inlined_call_operand.vmem [shape: f32[1,32], index: 3, kind: input, shape index: {}]
  %s4 = inlined_call_operand.vmem [shape: bf16[32,96], index: 4, kind: input, shape index: {}]
  %s5 = inlined_call_operand.vmem [shape: f32[1,96], index: 5, kind: input, shape index: {}]
  %s6 = inlined_call_operand.vmem [shape: bf16[32,32], index: 6, kind: input, shape index: {}]
  %s7 = inlined_call_operand.vmem [shape: f32[1,32], index: 7, kind: input, shape index: {}]
  %s8 = inlined_call_operand.vmem [shape: f32[1,32], index: 8, kind: input, shape index: {}]
  %s9 = inlined_call_operand.vmem [shape: f32[1,32], index: 9, kind: input, shape index: {}]
  %s10 = inlined_call_operand.vmem [shape: bf16[32,128], index: 10, kind: input, shape index: {}]
  %s11 = inlined_call_operand.vmem [shape: f32[1,128], index: 11, kind: input, shape index: {}]
  %s12 = inlined_call_operand.vmem [shape: bf16[128,32], index: 12, kind: input, shape index: {}]
  %s13 = inlined_call_operand.vmem [shape: f32[1,32], index: 13, kind: input, shape index: {}]
  %s14 = inlined_call_operand.hbm [shape: f32[16,32], index: 14, kind: output, shape index: {}]
  %s15 = sld [smem:[#allocation0]]
  $region66: #{tpu_custom_call.1} parent=0
    _
  %s17 = ssub.s32 1, %s15
  %s18 = scalar_select 0, %s17, %s15
  $region1: #{tpu_custom_call.1} parent=0
    #allocation2 [shape = 'u8[8192]{0}', space=vmem, size = 0x2000, scoped, tag = 'output window, operand 0, single buffered']
    #allocation3 [shape = 's32[1]{0}', space=sflag, size = 0x4, scoped, tag = 'scoped memory for tpu_custom_call.1']
    %19 = vsyncpa [#allocation3], 0
    // Predicated region
    $region2: #{tpu_custom_call.1} parent=1 // pred_check
      _
    $region3: #{tpu_custom_call.1} parent=1 // pred_check_branch
      %21 = sbr.rel (0) target = $region5
    $region4: #{tpu_custom_call.1} parent=1 // pred_region
      _
    $region5: #{tpu_custom_call.1} parent=1 // pred_fallthru
      _
    // Predicated region
    $region6: #{tpu_custom_call.1} parent=1 // pred_check
      _
    $region7: #{tpu_custom_call.1} parent=1 // pred_check_branch
      %23 = sbr.rel (0) target = $region9
    $region8: #{tpu_custom_call.1} parent=1 // pred_region
      _
    $region9: #{tpu_custom_call.1} parent=1 // pred_fallthru
      _
    // Predicated region
    $region10: #{tpu_custom_call.1} parent=1 // pred_check
      _
    $region11: #{tpu_custom_call.1} parent=1 // pred_check_branch
      %25 = sbr.rel (0) target = $region13
    $region12: #{tpu_custom_call.1} parent=1 // pred_region
      _
    $region13: #{tpu_custom_call.1} parent=1 // pred_fallthru
      _
    // Predicated region
    $region14: #{tpu_custom_call.1} parent=1 // pred_check
      _
    $region15: #{tpu_custom_call.1} parent=1 // pred_check_branch
      %27 = sbr.rel (0) target = $region17
    $region16: #{tpu_custom_call.1} parent=1 // pred_region
      _
    $region17: #{tpu_custom_call.1} parent=1 // pred_fallthru
      _
    // Predicated region
    $region18: #{tpu_custom_call.1} parent=1 // pred_check
      _
    $region19: #{tpu_custom_call.1} parent=1 // pred_check_branch
      %29 = sbr.rel (0) target = $region21
    $region20: #{tpu_custom_call.1} parent=1 // pred_region
      _
    $region21: #{tpu_custom_call.1} parent=1 // pred_fallthru
      _
    // Predicated region
    $region22: #{tpu_custom_call.1} parent=1 // pred_check
      _
    $region23: #{tpu_custom_call.1} parent=1 // pred_check_branch
      %31 = sbr.rel (0) target = $region25
    $region24: #{tpu_custom_call.1} parent=1 // pred_region
      _
    $region25: #{tpu_custom_call.1} parent=1 // pred_fallthru
      _
    // Predicated region
    $region26: #{tpu_custom_call.1} parent=1 // pred_check
      _
    $region27: #{tpu_custom_call.1} parent=1 // pred_check_branch
      %33 = sbr.rel (0) target = $region29
    $region28: #{tpu_custom_call.1} parent=1 // pred_region
      _
    $region29: #{tpu_custom_call.1} parent=1 // pred_fallthru
      _
    // Predicated region
    $region30: #{tpu_custom_call.1} parent=1 // pred_check
      _
    $region31: #{tpu_custom_call.1} parent=1 // pred_check_branch
      %35 = sbr.rel (0) target = $region33
    $region32: #{tpu_custom_call.1} parent=1 // pred_region
      _
    $region33: #{tpu_custom_call.1} parent=1 // pred_fallthru
      _
    // Predicated region
    $region34: #{tpu_custom_call.1} parent=1 // pred_check
      _
    $region35: #{tpu_custom_call.1} parent=1 // pred_check_branch
      %37 = sbr.rel (0) target = $region37
    $region36: #{tpu_custom_call.1} parent=1 // pred_region
      _
    $region37: #{tpu_custom_call.1} parent=1 // pred_fallthru
      _
    // Predicated region
    $region38: #{tpu_custom_call.1} parent=1 // pred_check
      _
    $region39: #{tpu_custom_call.1} parent=1 // pred_check_branch
      %39 = sbr.rel (0) target = $region41
    $region40: #{tpu_custom_call.1} parent=1 // pred_region
      _
    $region41: #{tpu_custom_call.1} parent=1 // pred_fallthru
      _
    // Predicated region
    $region42: #{tpu_custom_call.1} parent=1 // pred_check
      _
    $region43: #{tpu_custom_call.1} parent=1 // pred_check_branch
      %41 = sbr.rel (0) target = $region45
    $region44: #{tpu_custom_call.1} parent=1 // pred_region
      _
    $region45: #{tpu_custom_call.1} parent=1 // pred_fallthru
      _
    // Predicated region
    $region46: #{tpu_custom_call.1} parent=1 // pred_check
      _
    $region47: #{tpu_custom_call.1} parent=1 // pred_check_branch
      %43 = sbr.rel (0) target = $region49
    $region48: #{tpu_custom_call.1} parent=1 // pred_region
      _
    $region49: #{tpu_custom_call.1} parent=1 // pred_fallthru
      _
    // Predicated region
    $region50: #{tpu_custom_call.1} parent=1 // pred_check
      _
    $region51: #{tpu_custom_call.1} parent=1 // pred_check_branch
      %45 = sbr.rel (0) target = $region53
    $region52: #{tpu_custom_call.1} parent=1 // pred_region
      _
    $region53: #{tpu_custom_call.1} parent=1 // pred_fallthru
      _
    // Predicated region
    $region54: #{tpu_custom_call.1} parent=1 // pred_check
      _
    $region55: #{tpu_custom_call.1} parent=1 // pred_check_branch
      %47 = sbr.rel (0) target = $region57
    $region56: #{tpu_custom_call.1} parent=1 // pred_region
      _
    $region57: #{tpu_custom_call.1} parent=1 // pred_fallthru
      _
    %v49 = vld [vmem:[%s0] sm:$0xff]
    %v50 = vld [vmem:[%s0 + $0x8] sm:$0xff]
    %v51 = vld [vmem:[%s2] sm:$0x1]
    %v52 = vld [vmem:[%s3] sm:$0x1]
    %vm53 = vcmask 261120
    %v54 = vsel %vm53, %v49, 0.0
    %55 = vadd.xlane.f32.xlu0 %v54
    %v56 = vpop.xlane.xlu0 %55
    %v57 = vsel %vm53, %v50, 0.0
    %58 = vadd.xlane.f32.xlu0 %v57
    %v59 = vpop.xlane.xlu0 %58
    %v60 = vrcp.pop 32.0
    %v61 = vmul.f32 32.0, %v60
    %v62 = vsub.f32 1.0, %v61
    %v63 = vmul.f32 %v60, %v62
    %v64 = vadd.f32 %v60, %v63
    %vm65 = vweird.f32 %v60
    %v66 = vsel %vm65, %v60, %v64
    %v67 = vmul.f32 %v56, %v66
    %v68 = vmul.f32 %v59, %v66
    %v69 = vsub.f32 %v49, %v67
    %v70 = vsub.f32 %v50, %v68
    %v71 = vmul.f32 %v69, %v69
    %v72 = vmul.f32 %v70, %v70
    %v73 = vsel %vm53, %v71, 0.0
    %74 = vadd.xlane.f32.xlu0 %v73
    %v75 = vpop.xlane.xlu0 %74
    %v76 = vsel %vm53, %v72, 0.0
    %77 = vadd.xlane.f32.xlu0 %v76
    %v78 = vpop.xlane.xlu0 %77
    %v79 = vmul.f32 %v75, %v66
    %v80 = vmul.f32 %v78, %v66
    %v81 = vadd.f32 %v79, 1e-05
    %v82 = vadd.f32 %v80, 1e-05
    %v83 = vrsqrt.pop %v81
    %v84 = vmul.f32 %v83, %v81
    %v85 = vmul.f32 %v84, %v83
    %v86 = vmul.f32 0.5, %v85
    %v87 = vsub.f32 1.5, %v86
    %v88 = vmul.f32 %v83, %v87
    %vm89 = vweird.f32 %v81
    %vm90 = vweird.f32 %v83
    %vm91 = vmor %vm89, %vm90
    %v92 = vsel %vm91, %v83, %v88
    %v93 = vrsqrt.pop %v82
    %v94 = vmul.f32 %v93, %v82
    %v95 = vmul.f32 %v94, %v93
    %v96 = vmul.f32 0.5, %v95
    %v97 = vsub.f32 1.5, %v96
    %v98 = vmul.f32 %v93, %v97
    %vm99 = vweird.f32 %v82
    %vm100 = vweird.f32 %v93
    %vm101 = vmor %vm99, %vm100
    %v102 = vsel %vm101, %v93, %v98
    %v103 = vmul.f32 %v69, %v92
    %v104 = vmul.f32 %v70, %v102
    %v106 = vperm.slane %v51, 0
    %v108 = vmul.f32 %v103, %v106
    %v109 = vmul.f32 %v104, %v106
    %v111 = vperm.slane %v52, 0
    %v113 = vadd.f32 %v108, %v111
    %v114 = vadd.f32 %v109, %v111
    %v115 = vpack.c.bf16 %v114, %v113
    %v116 = vld [vmem:[%s4] sm:$0xf]
    %v117 = vld [vmem:[%s4 + $0x4] sm:$0xf]
    %v118 = vld [vmem:[%s4 + $0x8] sm:$0xf]
    %v119 = vld [vmem:[%s4 + $0xc] sm:$0xf]
    %v120 = vld [vmem:[%s5] sm:$0x1]
    %v122 = vperm.slane %v120, 0
    %v128 = vunpack.c.l.b16 %v116
    %v129 = vunpack.c.l.b16 %v117
    %v130 = vunpack.c.l.b16 %v118
    %v131 = vunpack.c.l.b16 %v119
    %v132 = vpack.c.b16 %v129, %v128
    %v133 = vpack.c.b16 %v131, %v130
    %v137 = vsel %vm53, %v115, 0
    %139 = vmatpush.bf16.msra.mxu0 0
    %140 = vmatpush.bf16.msra.mxu0 0
    %141 = vmatpush.bf16.msra.mxu0 0
    %142 = vmatpush.bf16.msra.mxu0 0
    %143 = vmatpush.bf16.msra.mxu0 0
    %144 = vmatpush.bf16.msra.mxu0 0
    %145 = vmatpush.bf16.msra.mxu0 %v133
    %146 = vmatpush.bf16.msra.mxu0 %v132
    %147 = vmatmul.bf16.gmra.mxu0 %v137
    %v148 = vpop.f32.mrf.mxu0
    %v149 = vadd.f32 %v122, %v148
    %v150 = vpop.f32.mrf.mxu0
    %v151 = vadd.f32 %v122, %v150
    %152 = vdwg.mxu0
    %v153 = vld [vmem:[%s1] sm:$0xff]
    %v154 = vpack.c.bf16 %v149, %v149
    %156 = vrot.lane.b32.xlu0 %v154, 96
    %v157 = vpop.permute.xlu0 %156
    %vm158 = vcmask 64512
    %v160 = vsel %vm158, %v154, 0
    %v163 = vsel %vm158, %v157, 0
    %165 = vmatpush.bf16.xpose.msra.mxu0 0
    %166 = vmatpush.bf16.xpose.msra.mxu0 0
    %167 = vmatpush.bf16.xpose.msra.mxu0 0
    %168 = vmatpush.bf16.xpose.msra.mxu0 0
    %169 = vmatpush.bf16.xpose.msra.mxu0 0
    %170 = vmatpush.bf16.xpose.msra.mxu0 0
    %171 = vmatpush.bf16.xpose.msra.mxu0 0
    %172 = vmatpush.bf16.xpose.msra.mxu0 %v163
    %173 = vmatmul.bf16.gmra.mxu0 %v160
    %v174 = vpop.f32.mrf.mxu0
    %v175 = vadd.f32 %v153, %v174
    %v176 = vpop.f32.mrf.mxu0
    %177 = vdwg.mxu0
    %v178 = vsel %vm158, %v175, -inf
    %179 = vmax.xlane.f32.xlu0 %v178
    %v180 = vpop.xlane.xlu0 %179
    %v181 = vsub.f32 %v175, %v180
    %v182 = vmul.f32 %v181, 1.442695
    %v183 = vpow.pop %v182
    %v184 = vsel %vm158, %v183, 0.0
    %185 = vadd.xlane.f32.xlu0 %v184
    %v186 = vpop.xlane.xlu0 %185
    %v187 = vrcp.pop %v186
    %v188 = vmul.f32 %v183, %v187
    %v189 = vpack.c.bf16 %v188, %v188
    %190 = vrot.lane.b32.xlu0 %v154, 64
    %v191 = vpop.permute.xlu0 %190
    %v193 = vsel %vm158, %v189, 0
    %vm195 = vcmask 1043456
    %v197 = vsel %vm195, %v191, 0
    %199 = vmatpush.bf16.msra.mxu0 0
    %200 = vmatpush.bf16.msra.mxu0 0
    %201 = vmatpush.bf16.msra.mxu0 0
    %202 = vmatpush.bf16.msra.mxu0 0
    %203 = vmatpush.bf16.msra.mxu0 0
    %204 = vmatpush.bf16.msra.mxu0 0
    %205 = vmatpush.bf16.msra.mxu0 0
    %206 = vmatpush.bf16.msra.mxu0 %v197
    %207 = vmatmul.bf16.gmra.mxu0 %v193
    %v208 = vpop.f32.mrf.mxu0
    %v209 = vadd.f32 0.0, %v208
    %v210 = vpop.f32.mrf.mxu0
    %211 = vdwg.mxu0
    %212 = vrot.lane.b32.xlu0 %v154, 120
    %v213 = vpop.permute.xlu0 %212
    %214 = vrot.lane.b32.xlu0 %v154, 88
    %v215 = vpop.permute.xlu0 %214
    %v217 = vsel %vm158, %v213, 0
    %v220 = vsel %vm158, %v215, 0
    %222 = vmatpush.bf16.xpose.msra.mxu0 0
    %223 = vmatpush.bf16.xpose.msra.mxu0 0
    %224 = vmatpush.bf16.xpose.msra.mxu0 0
    %225 = vmatpush.bf16.xpose.msra.mxu0 0
    %226 = vmatpush.bf16.xpose.msra.mxu0 0
    %227 = vmatpush.bf16.xpose.msra.mxu0 0
    %228 = vmatpush.bf16.xpose.msra.mxu0 0
    %229 = vmatpush.bf16.xpose.msra.mxu0 %v220
    %230 = vmatmul.bf16.gmra.mxu0 %v217
    %v231 = vpop.f32.mrf.mxu0
    %v232 = vadd.f32 %v153, %v231
    %v233 = vpop.f32.mrf.mxu0
    %234 = vdwg.mxu0
    %v235 = vsel %vm158, %v232, -inf
    %236 = vmax.xlane.f32.xlu0 %v235
    %v237 = vpop.xlane.xlu0 %236
    %v238 = vsub.f32 %v232, %v237
    %v239 = vmul.f32 %v238, 1.442695
    %v240 = vpow.pop %v239
    %v241 = vsel %vm158, %v240, 0.0
    %242 = vadd.xlane.f32.xlu0 %v241
    %v243 = vpop.xlane.xlu0 %242
    %v244 = vrcp.pop %v243
    %v245 = vmul.f32 %v240, %v244
    %v246 = vpack.c.bf16 %v245, %v245
    %247 = vrot.lane.b32.xlu0 %v154, 56
    %v248 = vpop.permute.xlu0 %247
    %v250 = vsel %vm158, %v246, 0
    %v253 = vsel %vm195, %v248, 0
    %255 = vmatpush.bf16.msra.mxu0 0
    %256 = vmatpush.bf16.msra.mxu0 0
    %257 = vmatpush.bf16.msra.mxu0 0
    %258 = vmatpush.bf16.msra.mxu0 0
    %259 = vmatpush.bf16.msra.mxu0 0
    %260 = vmatpush.bf16.msra.mxu0 0
    %261 = vmatpush.bf16.msra.mxu0 0
    %262 = vmatpush.bf16.msra.mxu0 %v253
    %263 = vmatmul.bf16.gmra.mxu0 %v250
    %v264 = vpop.f32.mrf.mxu0
    %v265 = vadd.f32 0.0, %v264
    %v266 = vpop.f32.mrf.mxu0
    %267 = vdwg.mxu0
    %268 = vrot.lane.b32.xlu0 %v154, 112
    %v269 = vpop.permute.xlu0 %268
    %270 = vrot.lane.b32.xlu0 %v154, 80
    %v271 = vpop.permute.xlu0 %270
    %v273 = vsel %vm158, %v269, 0
    %v276 = vsel %vm158, %v271, 0
    %278 = vmatpush.bf16.xpose.msra.mxu0 0
    %279 = vmatpush.bf16.xpose.msra.mxu0 0
    %280 = vmatpush.bf16.xpose.msra.mxu0 0
    %281 = vmatpush.bf16.xpose.msra.mxu0 0
    %282 = vmatpush.bf16.xpose.msra.mxu0 0
    %283 = vmatpush.bf16.xpose.msra.mxu0 0
    %284 = vmatpush.bf16.xpose.msra.mxu0 0
    %285 = vmatpush.bf16.xpose.msra.mxu0 %v276
    %286 = vmatmul.bf16.gmra.mxu0 %v273
    %v287 = vpop.f32.mrf.mxu0
    %v288 = vadd.f32 %v153, %v287
    %v289 = vpop.f32.mrf.mxu0
    %290 = vdwg.mxu0
    %v291 = vsel %vm158, %v288, -inf
    %292 = vmax.xlane.f32.xlu0 %v291
    %v293 = vpop.xlane.xlu0 %292
    %v294 = vsub.f32 %v288, %v293
    %v295 = vmul.f32 %v294, 1.442695
    %v296 = vpow.pop %v295
    %v297 = vsel %vm158, %v296, 0.0
    %298 = vadd.xlane.f32.xlu0 %v297
    %v299 = vpop.xlane.xlu0 %298
    %v300 = vrcp.pop %v299
    %v301 = vmul.f32 %v296, %v300
    %v302 = vpack.c.bf16 %v301, %v301
    %303 = vrot.lane.b32.xlu0 %v154, 48
    %v304 = vpop.permute.xlu0 %303
    %v306 = vsel %vm158, %v302, 0
    %v309 = vsel %vm195, %v304, 0
    %311 = vmatpush.bf16.msra.mxu0 0
    %312 = vmatpush.bf16.msra.mxu0 0
    %313 = vmatpush.bf16.msra.mxu0 0
    %314 = vmatpush.bf16.msra.mxu0 0
    %315 = vmatpush.bf16.msra.mxu0 0
    %316 = vmatpush.bf16.msra.mxu0 0
    %317 = vmatpush.bf16.msra.mxu0 0
    %318 = vmatpush.bf16.msra.mxu0 %v309
    %319 = vmatmul.bf16.gmra.mxu0 %v306
    %v320 = vpop.f32.mrf.mxu0
    %v321 = vadd.f32 0.0, %v320
    %v322 = vpop.f32.mrf.mxu0
    %323 = vdwg.mxu0
    %324 = vrot.lane.b32.xlu0 %v154, 104
    %v325 = vpop.permute.xlu0 %324
    %326 = vrot.lane.b32.xlu0 %v154, 72
    %v327 = vpop.permute.xlu0 %326
    %v329 = vsel %vm158, %v325, 0
    %v332 = vsel %vm158, %v327, 0
    %334 = vmatpush.bf16.xpose.msra.mxu0 0
    %335 = vmatpush.bf16.xpose.msra.mxu0 0
    %336 = vmatpush.bf16.xpose.msra.mxu0 0
    %337 = vmatpush.bf16.xpose.msra.mxu0 0
    %338 = vmatpush.bf16.xpose.msra.mxu0 0
    %339 = vmatpush.bf16.xpose.msra.mxu0 0
    %340 = vmatpush.bf16.xpose.msra.mxu0 0
    %341 = vmatpush.bf16.xpose.msra.mxu0 %v332
    %342 = vmatmul.bf16.gmra.mxu0 %v329
    %v343 = vpop.f32.mrf.mxu0
    %v344 = vadd.f32 %v153, %v343
    %v345 = vpop.f32.mrf.mxu0
    %346 = vdwg.mxu0
    %v347 = vsel %vm158, %v344, -inf
    %348 = vmax.xlane.f32.xlu0 %v347
    %v349 = vpop.xlane.xlu0 %348
    %v350 = vsub.f32 %v344, %v349
    %v351 = vmul.f32 %v350, 1.442695
    %v352 = vpow.pop %v351
    %v353 = vsel %vm158, %v352, 0.0
    %354 = vadd.xlane.f32.xlu0 %v353
    %v355 = vpop.xlane.xlu0 %354
    %v356 = vrcp.pop %v355
    %v357 = vmul.f32 %v352, %v356
    %v358 = vpack.c.bf16 %v357, %v357
    %359 = vrot.lane.b32.xlu0 %v154, 40
    %v360 = vpop.permute.xlu0 %359
    %v362 = vsel %vm158, %v358, 0
    %v365 = vsel %vm195, %v360, 0
    %367 = vmatpush.bf16.msra.mxu0 0
    %368 = vmatpush.bf16.msra.mxu0 0
    %369 = vmatpush.bf16.msra.mxu0 0
    %370 = vmatpush.bf16.msra.mxu0 0
    %371 = vmatpush.bf16.msra.mxu0 0
    %372 = vmatpush.bf16.msra.mxu0 0
    %373 = vmatpush.bf16.msra.mxu0 0
    %374 = vmatpush.bf16.msra.mxu0 %v365
    %375 = vmatmul.bf16.gmra.mxu0 %v362
    %v376 = vpop.f32.mrf.mxu0
    %v377 = vadd.f32 0.0, %v376
    %v378 = vpop.f32.mrf.mxu0
    %379 = vdwg.mxu0
    %381 = vrot.lane.b32.xlu0 %v265, 8
    %v382 = vpop.permute.xlu0 %381
    %385 = vrot.lane.b32.xlu0 %v321, 16
    %v386 = vpop.permute.xlu0 %385
    %389 = vrot.lane.b32.xlu0 %v377, 24
    %v390 = vpop.permute.xlu0 %389
    %v392 = vsel %vm158, %v209, %v382
    %vm393 = vcmask 130048
    %v394 = vsel %vm393, %v392, %v386
    %vm395 = vcmask 195584
    %v396 = vsel %vm395, %v394, %v390
    %v397 = vpack.c.bf16 %v151, %v151
    %399 = vrot.lane.b32.xlu0 %v397, 96
    %v400 = vpop.permute.xlu0 %399
    %v402 = vsel %vm158, %v397, 0
    %v405 = vsel %vm158, %v400, 0
    %407 = vmatpush.bf16.xpose.msra.mxu0 0
    %408 = vmatpush.bf16.xpose.msra.mxu0 0
    %409 = vmatpush.bf16.xpose.msra.mxu0 0
    %410 = vmatpush.bf16.xpose.msra.mxu0 0
    %411 = vmatpush.bf16.xpose.msra.mxu0 0
    %412 = vmatpush.bf16.xpose.msra.mxu0 0
    %413 = vmatpush.bf16.xpose.msra.mxu0 0
    %414 = vmatpush.bf16.xpose.msra.mxu0 %v405
    %415 = vmatmul.bf16.gmra.mxu0 %v402
    %v416 = vpop.f32.mrf.mxu0
    %v417 = vadd.f32 %v153, %v416
    %v418 = vpop.f32.mrf.mxu0
    %419 = vdwg.mxu0
    %v420 = vsel %vm158, %v417, -inf
    %421 = vmax.xlane.f32.xlu0 %v420
    %v422 = vpop.xlane.xlu0 %421
    %v423 = vsub.f32 %v417, %v422
    %v424 = vmul.f32 %v423, 1.442695
    %v425 = vpow.pop %v424
    %v426 = vsel %vm158, %v425, 0.0
    %427 = vadd.xlane.f32.xlu0 %v426
    %v428 = vpop.xlane.xlu0 %427
    %v429 = vrcp.pop %v428
    %v430 = vmul.f32 %v425, %v429
    %v431 = vpack.c.bf16 %v430, %v430
    %432 = vrot.lane.b32.xlu0 %v397, 64
    %v433 = vpop.permute.xlu0 %432
    %v435 = vsel %vm158, %v431, 0
    %v438 = vsel %vm195, %v433, 0
    %440 = vmatpush.bf16.msra.mxu0 0
    %441 = vmatpush.bf16.msra.mxu0 0
    %442 = vmatpush.bf16.msra.mxu0 0
    %443 = vmatpush.bf16.msra.mxu0 0
    %444 = vmatpush.bf16.msra.mxu0 0
    %445 = vmatpush.bf16.msra.mxu0 0
    %446 = vmatpush.bf16.msra.mxu0 0
    %447 = vmatpush.bf16.msra.mxu0 %v438
    %448 = vmatmul.bf16.gmra.mxu0 %v435
    %v449 = vpop.f32.mrf.mxu0
    %v450 = vadd.f32 0.0, %v449
    %v451 = vpop.f32.mrf.mxu0
    %452 = vdwg.mxu0
    %453 = vrot.lane.b32.xlu0 %v397, 120
    %v454 = vpop.permute.xlu0 %453
    %455 = vrot.lane.b32.xlu0 %v397, 88
    %v456 = vpop.permute.xlu0 %455
    %v458 = vsel %vm158, %v454, 0
    %v461 = vsel %vm158, %v456, 0
    %463 = vmatpush.bf16.xpose.msra.mxu0 0
    %464 = vmatpush.bf16.xpose.msra.mxu0 0
    %465 = vmatpush.bf16.xpose.msra.mxu0 0
    %466 = vmatpush.bf16.xpose.msra.mxu0 0
    %467 = vmatpush.bf16.xpose.msra.mxu0 0
    %468 = vmatpush.bf16.xpose.msra.mxu0 0
    %469 = vmatpush.bf16.xpose.msra.mxu0 0
    %470 = vmatpush.bf16.xpose.msra.mxu0 %v461
    %471 = vmatmul.bf16.gmra.mxu0 %v458
    %v472 = vpop.f32.mrf.mxu0
    %v473 = vadd.f32 %v153, %v472
    %v474 = vpop.f32.mrf.mxu0
    %475 = vdwg.mxu0
    %v476 = vsel %vm158, %v473, -inf
    %477 = vmax.xlane.f32.xlu0 %v476
    %v478 = vpop.xlane.xlu0 %477
    %v479 = vsub.f32 %v473, %v478
    %v480 = vmul.f32 %v479, 1.442695
    %v481 = vpow.pop %v480
    %v482 = vsel %vm158, %v481, 0.0
    %483 = vadd.xlane.f32.xlu0 %v482
    %v484 = vpop.xlane.xlu0 %483
    %v485 = vrcp.pop %v484
    %v486 = vmul.f32 %v481, %v485
    %v487 = vpack.c.bf16 %v486, %v486
    %488 = vrot.lane.b32.xlu0 %v397, 56
    %v489 = vpop.permute.xlu0 %488
    %v491 = vsel %vm158, %v487, 0
    %v494 = vsel %vm195, %v489, 0
    %496 = vmatpush.bf16.msra.mxu0 0
    %497 = vmatpush.bf16.msra.mxu0 0
    %498 = vmatpush.bf16.msra.mxu0 0
    %499 = vmatpush.bf16.msra.mxu0 0
    %500 = vmatpush.bf16.msra.mxu0 0
    %501 = vmatpush.bf16.msra.mxu0 0
    %502 = vmatpush.bf16.msra.mxu0 0
    %503 = vmatpush.bf16.msra.mxu0 %v494
    %504 = vmatmul.bf16.gmra.mxu0 %v491
    %v505 = vpop.f32.mrf.mxu0
    %v506 = vadd.f32 0.0, %v505
    %v507 = vpop.f32.mrf.mxu0
    %508 = vdwg.mxu0
    %509 = vrot.lane.b32.xlu0 %v397, 112
    %v510 = vpop.permute.xlu0 %509
    %511 = vrot.lane.b32.xlu0 %v397, 80
    %v512 = vpop.permute.xlu0 %511
    %v514 = vsel %vm158, %v510, 0
    %v517 = vsel %vm158, %v512, 0
    %519 = vmatpush.bf16.xpose.msra.mxu0 0
    %520 = vmatpush.bf16.xpose.msra.mxu0 0
    %521 = vmatpush.bf16.xpose.msra.mxu0 0
    %522 = vmatpush.bf16.xpose.msra.mxu0 0
    %523 = vmatpush.bf16.xpose.msra.mxu0 0
    %524 = vmatpush.bf16.xpose.msra.mxu0 0
    %525 = vmatpush.bf16.xpose.msra.mxu0 0
    %526 = vmatpush.bf16.xpose.msra.mxu0 %v517
    %527 = vmatmul.bf16.gmra.mxu0 %v514
    %v528 = vpop.f32.mrf.mxu0
    %v529 = vadd.f32 %v153, %v528
    %v530 = vpop.f32.mrf.mxu0
    %531 = vdwg.mxu0
    %v532 = vsel %vm158, %v529, -inf
    %533 = vmax.xlane.f32.xlu0 %v532
    %v534 = vpop.xlane.xlu0 %533
    %v535 = vsub.f32 %v529, %v534
    %v536 = vmul.f32 %v535, 1.442695
    %v537 = vpow.pop %v536
    %v538 = vsel %vm158, %v537, 0.0
    %539 = vadd.xlane.f32.xlu0 %v538
    %v540 = vpop.xlane.xlu0 %539
    %v541 = vrcp.pop %v540
    %v542 = vmul.f32 %v537, %v541
    %v543 = vpack.c.bf16 %v542, %v542
    %544 = vrot.lane.b32.xlu0 %v397, 48
    %v545 = vpop.permute.xlu0 %544
    %v547 = vsel %vm158, %v543, 0
    %v550 = vsel %vm195, %v545, 0
    %552 = vmatpush.bf16.msra.mxu0 0
    %553 = vmatpush.bf16.msra.mxu0 0
    %554 = vmatpush.bf16.msra.mxu0 0
    %555 = vmatpush.bf16.msra.mxu0 0
    %556 = vmatpush.bf16.msra.mxu0 0
    %557 = vmatpush.bf16.msra.mxu0 0
    %558 = vmatpush.bf16.msra.mxu0 0
    %559 = vmatpush.bf16.msra.mxu0 %v550
    %560 = vmatmul.bf16.gmra.mxu0 %v547
    %v561 = vpop.f32.mrf.mxu0
    %v562 = vadd.f32 0.0, %v561
    %v563 = vpop.f32.mrf.mxu0
    %564 = vdwg.mxu0
    %565 = vrot.lane.b32.xlu0 %v397, 104
    %v566 = vpop.permute.xlu0 %565
    %567 = vrot.lane.b32.xlu0 %v397, 72
    %v568 = vpop.permute.xlu0 %567
    %v570 = vsel %vm158, %v566, 0
    %v573 = vsel %vm158, %v568, 0
    %575 = vmatpush.bf16.xpose.msra.mxu0 0
    %576 = vmatpush.bf16.xpose.msra.mxu0 0
    %577 = vmatpush.bf16.xpose.msra.mxu0 0
    %578 = vmatpush.bf16.xpose.msra.mxu0 0
    %579 = vmatpush.bf16.xpose.msra.mxu0 0
    %580 = vmatpush.bf16.xpose.msra.mxu0 0
    %581 = vmatpush.bf16.xpose.msra.mxu0 0
    %582 = vmatpush.bf16.xpose.msra.mxu0 %v573
    %583 = vmatmul.bf16.gmra.mxu0 %v570
    %v584 = vpop.f32.mrf.mxu0
    %v585 = vadd.f32 %v153, %v584
    %v586 = vpop.f32.mrf.mxu0
    %587 = vdwg.mxu0
    %v588 = vsel %vm158, %v585, -inf
    %589 = vmax.xlane.f32.xlu0 %v588
    %v590 = vpop.xlane.xlu0 %589
    %v591 = vsub.f32 %v585, %v590
    %v592 = vmul.f32 %v591, 1.442695
    %v593 = vpow.pop %v592
    %v594 = vsel %vm158, %v593, 0.0
    %595 = vadd.xlane.f32.xlu0 %v594
    %v596 = vpop.xlane.xlu0 %595
    %v597 = vrcp.pop %v596
    %v598 = vmul.f32 %v593, %v597
    %v599 = vpack.c.bf16 %v598, %v598
    %600 = vrot.lane.b32.xlu0 %v397, 40
    %v601 = vpop.permute.xlu0 %600
    %v603 = vsel %vm158, %v599, 0
    %v606 = vsel %vm195, %v601, 0
    %608 = vmatpush.bf16.msra.mxu0 0
    %609 = vmatpush.bf16.msra.mxu0 0
    %610 = vmatpush.bf16.msra.mxu0 0
    %611 = vmatpush.bf16.msra.mxu0 0
    %612 = vmatpush.bf16.msra.mxu0 0
    %613 = vmatpush.bf16.msra.mxu0 0
    %614 = vmatpush.bf16.msra.mxu0 0
    %615 = vmatpush.bf16.msra.mxu0 %v606
    %616 = vmatmul.bf16.gmra.mxu0 %v603
    %v617 = vpop.f32.mrf.mxu0
    %v618 = vadd.f32 0.0, %v617
    %v619 = vpop.f32.mrf.mxu0
    %620 = vdwg.mxu0
    %622 = vrot.lane.b32.xlu0 %v506, 8
    %v623 = vpop.permute.xlu0 %622
    %626 = vrot.lane.b32.xlu0 %v562, 16
    %v627 = vpop.permute.xlu0 %626
    %630 = vrot.lane.b32.xlu0 %v618, 24
    %v631 = vpop.permute.xlu0 %630
    %v633 = vsel %vm158, %v450, %v623
    %v634 = vsel %vm393, %v633, %v627
    %v635 = vsel %vm395, %v634, %v631
    %v636 = vpack.c.bf16 %v635, %v396
    %v637 = vld [vmem:[%s6] sm:$0xf]
    %v638 = vld [vmem:[%s6 + $0x4] sm:$0xf]
    %v639 = vld [vmem:[%s6 + $0x8] sm:$0xf]
    %v640 = vld [vmem:[%s6 + $0xc] sm:$0xf]
    %v641 = vld [vmem:[%s7] sm:$0x1]
    %v643 = vperm.slane %v641, 0
    %v649 = vunpack.c.l.b16 %v637
    %v650 = vunpack.c.l.b16 %v638
    %v651 = vunpack.c.l.b16 %v639
    %v652 = vunpack.c.l.b16 %v640
    %v653 = vpack.c.b16 %v650, %v649
    %v654 = vpack.c.b16 %v652, %v651
    %v658 = vsel %vm53, %v636, 0
    %660 = vmatpush.bf16.msra.mxu0 0
    %661 = vmatpush.bf16.msra.mxu0 0
    %662 = vmatpush.bf16.msra.mxu0 0
    %663 = vmatpush.bf16.msra.mxu0 0
    %664 = vmatpush.bf16.msra.mxu0 0
    %665 = vmatpush.bf16.msra.mxu0 0
    %666 = vmatpush.bf16.msra.mxu0 %v654
    %667 = vmatpush.bf16.msra.mxu0 %v653
    %668 = vmatmul.bf16.gmra.mxu0 %v658
    %v669 = vpop.f32.mrf.mxu0
    %v670 = vadd.f32 %v643, %v669
    %v671 = vpop.f32.mrf.mxu0
    %v672 = vadd.f32 %v643, %v671
    %673 = vdwg.mxu0
    %v674 = vadd.f32 %v113, %v670
    %v675 = vadd.f32 %v114, %v672
    %v676 = vld [vmem:[%s8] sm:$0x1]
    %v677 = vld [vmem:[%s9] sm:$0x1]
    %v678 = vsel %vm53, %v674, 0.0
    %679 = vadd.xlane.f32.xlu0 %v678
    %v680 = vpop.xlane.xlu0 %679
    %v681 = vsel %vm53, %v675, 0.0
    %682 = vadd.xlane.f32.xlu0 %v681
    %v683 = vpop.xlane.xlu0 %682
    %v684 = vmul.f32 %v680, %v66
    %v685 = vmul.f32 %v683, %v66
    %v686 = vsub.f32 %v674, %v684
    %v687 = vsub.f32 %v675, %v685
    %v688 = vmul.f32 %v686, %v686
    %v689 = vmul.f32 %v687, %v687
    %v690 = vsel %vm53, %v688, 0.0
    %691 = vadd.xlane.f32.xlu0 %v690
    %v692 = vpop.xlane.xlu0 %691
    %v693 = vsel %vm53, %v689, 0.0
    %694 = vadd.xlane.f32.xlu0 %v693
    %v695 = vpop.xlane.xlu0 %694
    %v696 = vmul.f32 %v692, %v66
    %v697 = vmul.f32 %v695, %v66
    %v698 = vadd.f32 %v696, 1e-05
    %v699 = vadd.f32 %v697, 1e-05
    %v700 = vrsqrt.pop %v698
    %v701 = vmul.f32 %v700, %v698
    %v702 = vmul.f32 %v701, %v700
    %v703 = vmul.f32 0.5, %v702
    %v704 = vsub.f32 1.5, %v703
    %v705 = vmul.f32 %v700, %v704
    %vm706 = vweird.f32 %v698
    %vm707 = vweird.f32 %v700
    %vm708 = vmor %vm706, %vm707
    %v709 = vsel %vm708, %v700, %v705
    %v710 = vrsqrt.pop %v699
    %v711 = vmul.f32 %v710, %v699
    %v712 = vmul.f32 %v711, %v710
    %v713 = vmul.f32 0.5, %v712
    %v714 = vsub.f32 1.5, %v713
    %v715 = vmul.f32 %v710, %v714
    %vm716 = vweird.f32 %v699
    %vm717 = vweird.f32 %v710
    %vm718 = vmor %vm716, %vm717
    %v719 = vsel %vm718, %v710, %v715
    %v720 = vmul.f32 %v686, %v709
    %v721 = vmul.f32 %v687, %v719
    %v723 = vperm.slane %v676, 0
    %v725 = vmul.f32 %v720, %v723
    %v726 = vmul.f32 %v721, %v723
    %v728 = vperm.slane %v677, 0
    %v730 = vadd.f32 %v725, %v728
    %v731 = vadd.f32 %v726, %v728
    %v732 = vpack.c.bf16 %v731, %v730
    %v733 = vld [vmem:[%s10] sm:$0xf]
    %v734 = vld [vmem:[%s10 + $0x4] sm:$0xf]
    %v735 = vld [vmem:[%s10 + $0x8] sm:$0xf]
    %v736 = vld [vmem:[%s10 + $0xc] sm:$0xf]
    %v737 = vld [vmem:[%s11] sm:$0x1]
    %v739 = vperm.slane %v737, 0
    %v745 = vunpack.c.l.b16 %v733
    %v746 = vunpack.c.l.b16 %v734
    %v747 = vunpack.c.l.b16 %v735
    %v748 = vunpack.c.l.b16 %v736
    %v749 = vpack.c.b16 %v746, %v745
    %v750 = vpack.c.b16 %v748, %v747
    %v754 = vsel %vm53, %v732, 0
    %756 = vmatpush.bf16.msra.mxu0 0
    %757 = vmatpush.bf16.msra.mxu0 0
    %758 = vmatpush.bf16.msra.mxu0 0
    %759 = vmatpush.bf16.msra.mxu0 0
    %760 = vmatpush.bf16.msra.mxu0 0
    %761 = vmatpush.bf16.msra.mxu0 0
    %762 = vmatpush.bf16.msra.mxu0 %v750
    %763 = vmatpush.bf16.msra.mxu0 %v749
    %764 = vmatmul.bf16.gmra.mxu0 %v754
    %v765 = vpop.f32.mrf.mxu0
    %v766 = vadd.f32 %v739, %v765
    %v767 = vpop.f32.mrf.mxu0
    %v768 = vadd.f32 %v739, %v767
    %769 = vdwg.mxu0
    %v770 = vmul.f32 %v766, 0.5
    %v771 = vmul.f32 %v768, 0.5
    %v772 = vmul.f32 %v766, 0.70710677
    %v773 = vmul.f32 %v768, 0.70710677
    %v774 = vmul.f32 %v772, %v772
    %v775 = vmin.f32 16.0, %v774
    %v776 = vmul.f32 %v775, 2.1237322e-06
    %v777 = vadd.f32 %v776, 0.00028619796
    %v778 = vmul.f32 %v775, %v777
    %v779 = vadd.f32 %v778, 0.0036580483
    %v780 = vmul.f32 %v775, %v779
    %v781 = vadd.f32 %v780, 0.05243302
    %v782 = vmul.f32 %v775, %v781
    %v783 = vadd.f32 %v782, 0.18741608
    %v784 = vmul.f32 %v775, %v783
    %v785 = vadd.f32 %v784, 1.1283791
    %v786 = vmul.f32 %v772, %v785
    %v787 = vmul.f32 %v775, 3.8918573e-05
    %v788 = vadd.f32 %v787, 0.001143296
    %v789 = vmul.f32 %v775, %v788
    %v790 = vadd.f32 %v789, 0.014752088
    %v791 = vmul.f32 %v775, %v790
    %v792 = vadd.f32 %v791, 0.112945676
    %v793 = vmul.f32 %v775, %v792
    %v794 = vadd.f32 %v793, 0.4994258
    %v795 = vmul.f32 %v775, %v794
    %v796 = vadd.f32 %v795, 1.0
    %v797 = vrcp.pop %v796
    %v798 = vmul.f32 %v796, %v797
    %v799 = vsub.f32 1.0, %v798
    %v800 = vmul.f32 %v797, %v799
    %v801 = vadd.f32 %v797, %v800
    %vm802 = vweird.f32 %v796
    %vm803 = vweird.f32 %v797
    %vm804 = vmor %vm802, %vm803
    %v805 = vsel %vm804, %v797, %v801
    %v806 = vand.u32 2147483647, %v796
    %vm807 = vcmp.eq.f32.partialorder %v806, 8.507059e+37
    %v808 = vand.u32 %v796, 2147483648
    %v809 = vor.u32 1.1754944e-38, %v808
    %v810 = vsel %vm807, %v809, %v805
    %v811 = vmul.f32 %v786, %v810
    %v812 = vmin.f32 %v811, 1.0
    %v813 = vmax.f32 %v812, -1.0
    %v814 = vmul.f32 %v773, %v773
    %v815 = vmin.f32 16.0, %v814
    %v816 = vmul.f32 %v815, 2.1237322e-06
    %v817 = vadd.f32 %v816, 0.00028619796
    %v818 = vmul.f32 %v815, %v817
    %v819 = vadd.f32 %v818, 0.0036580483
    %v820 = vmul.f32 %v815, %v819
    %v821 = vadd.f32 %v820, 0.05243302
    %v822 = vmul.f32 %v815, %v821
    %v823 = vadd.f32 %v822, 0.18741608
    %v824 = vmul.f32 %v815, %v823
    %v825 = vadd.f32 %v824, 1.1283791
    %v826 = vmul.f32 %v773, %v825
    %v827 = vmul.f32 %v815, 3.8918573e-05
    %v828 = vadd.f32 %v827, 0.001143296
    %v829 = vmul.f32 %v815, %v828
    %v830 = vadd.f32 %v829, 0.014752088
    %v831 = vmul.f32 %v815, %v830
    %v832 = vadd.f32 %v831, 0.112945676
    %v833 = vmul.f32 %v815, %v832
    %v834 = vadd.f32 %v833, 0.4994258
    %v835 = vmul.f32 %v815, %v834
    %v836 = vadd.f32 %v835, 1.0
    %v837 = vrcp.pop %v836
    %v838 = vmul.f32 %v836, %v837
    %v839 = vsub.f32 1.0, %v838
    %v840 = vmul.f32 %v837, %v839
    %v841 = vadd.f32 %v837, %v840
    %vm842 = vweird.f32 %v836
    %vm843 = vweird.f32 %v837
    %vm844 = vmor %vm842, %vm843
    %v845 = vsel %vm844, %v837, %v841
    %v846 = vand.u32 2147483647, %v836
    %vm847 = vcmp.eq.f32.partialorder %v846, 8.507059e+37
    %v848 = vand.u32 %v836, 2147483648
    %v849 = vor.u32 1.1754944e-38, %v848
    %v850 = vsel %vm847, %v849, %v845
    %v851 = vmul.f32 %v826, %v850
    %v852 = vmin.f32 %v851, 1.0
    %v853 = vmax.f32 %v852, -1.0
    %v854 = vadd.f32 %v813, 1.0
    %v855 = vadd.f32 %v853, 1.0
    %v856 = vmul.f32 %v770, %v854
    %v857 = vmul.f32 %v771, %v855
    %v858 = vpack.c.bf16 %v857, %v856
    %v859 = vld [vmem:[%s12] sm:$0xf]
    %v860 = vld [vmem:[%s12 + $0x4] sm:$0xf]
    %v861 = vld [vmem:[%s12 + $0x8] sm:$0xf]
    %v862 = vld [vmem:[%s12 + $0xc] sm:$0xf]
    %v863 = vld [vmem:[%s12 + $0x10] sm:$0xf]
    %v864 = vld [vmem:[%s12 + $0x14] sm:$0xf]
    %v865 = vld [vmem:[%s12 + $0x18] sm:$0xf]
    %v866 = vld [vmem:[%s12 + $0x1c] sm:$0xf]
    %v867 = vld [vmem:[%s12 + $0x20] sm:$0xf]
    %v868 = vld [vmem:[%s12 + $0x24] sm:$0xf]
    %v869 = vld [vmem:[%s12 + $0x28] sm:$0xf]
    %v870 = vld [vmem:[%s12 + $0x2c] sm:$0xf]
    %v871 = vld [vmem:[%s12 + $0x30] sm:$0xf]
    %v872 = vld [vmem:[%s12 + $0x34] sm:$0xf]
    %v873 = vld [vmem:[%s12 + $0x38] sm:$0xf]
    %v874 = vld [vmem:[%s12 + $0x3c] sm:$0xf]
    %v875 = vld [vmem:[%s13] sm:$0x1]
    %v877 = vperm.slane %v875, 0
    %v895 = vunpack.c.l.b16 %v859
    %v896 = vunpack.c.l.b16 %v860
    %v897 = vunpack.c.l.b16 %v861
    %v898 = vunpack.c.l.b16 %v862
    %v899 = vunpack.c.l.b16 %v863
    %v900 = vunpack.c.l.b16 %v864
    %v901 = vunpack.c.l.b16 %v865
    %v902 = vunpack.c.l.b16 %v866
    %v903 = vunpack.c.l.b16 %v867
    %v904 = vunpack.c.l.b16 %v868
    %v905 = vunpack.c.l.b16 %v869
    %v906 = vunpack.c.l.b16 %v870
    %v907 = vunpack.c.l.b16 %v871
    %v908 = vunpack.c.l.b16 %v872
    %v909 = vunpack.c.l.b16 %v873
    %v910 = vunpack.c.l.b16 %v874
    %v911 = vpack.c.b16 %v896, %v895
    %v912 = vpack.c.b16 %v898, %v897
    %v913 = vpack.c.b16 %v900, %v899
    %v914 = vpack.c.b16 %v902, %v901
    %v915 = vpack.c.b16 %v904, %v903
    %v916 = vpack.c.b16 %v906, %v905
    %v917 = vpack.c.b16 %v908, %v907
    %v918 = vpack.c.b16 %v910, %v909
    %927 = vmatpush.bf16.msra.mxu0 %v918
    %928 = vmatpush.bf16.msra.mxu0 %v917
    %929 = vmatpush.bf16.msra.mxu0 %v916
    %930 = vmatpush.bf16.msra.mxu0 %v915
    %931 = vmatpush.bf16.msra.mxu0 %v914
    %932 = vmatpush.bf16.msra.mxu0 %v913
    %933 = vmatpush.bf16.msra.mxu0 %v912
    %934 = vmatpush.bf16.msra.mxu0 %v911
    %935 = vmatmul.bf16.gmra.mxu0 %v858
    %v936 = vpop.f32.mrf.mxu0
    %v937 = vadd.f32 %v877, %v936
    %v938 = vpop.f32.mrf.mxu0
    %v939 = vadd.f32 %v877, %v938
    %940 = vdwg.mxu0
    %v941 = vadd.f32 %v674, %v937
    %v942 = vadd.f32 %v675, %v939
    %943 = vst.msk [vmem:[#allocation2] sm:$0xff] %vm53, %v941
    %944 = vst.msk [vmem:[#allocation2 + $0x8] sm:$0xff] %vm53, %v942
    // Predicated region
    $region58: #{tpu_custom_call.1} parent=1 // pred_check
      _
    $region59: #{tpu_custom_call.1} parent=1 // pred_check_branch
      %946 = sbr.rel (0) target = $region61
    $region60: #{tpu_custom_call.1} parent=1 // pred_region
      %948 = vsyncadd [#allocation3], 0
      %s949 = sshll.u32 [#allocation2], 4
      %s950 = int_to_ptr.vmem [resolvable:$true] %s949
      %s951 = sshll.u32 %s14, 4
      %s952 = int_to_ptr.hbm [resolvable:$true] %s951
      %957 = dma.vmem_to_hbm [thread:$0]  %s950, 256, %s952, [#allocation3], 128, 128, 8
    $region61: #{tpu_custom_call.1} parent=1 // pred_fallthru
      _
    // Predicated region
    $region62: #{tpu_custom_call.1} parent=1 // pred_check
      _
    $region63: #{tpu_custom_call.1} parent=1 // pred_check_branch
      %959 = sbr.rel (0) target = $region65
    $region64: #{tpu_custom_call.1} parent=1 // pred_region
      %961 = dma.done [#allocation3], 256
    $region65: #{tpu_custom_call.1} parent=1 // pred_fallthru
      _
    %962 = vsyncpa [#allocation3], 1

</llo_original>
